<compile_context>
chip_gen: v7x
topology: tpu7x:2x2x1
jax: 0.10.0
libtpu: 0.0.40
codegen_flags: <defaults>
</compile_context>

<pallas_src>
import functools

import jax
import jax.numpy as jnp
from jax import lax
from jax.experimental import pallas as pl
from jax.experimental.pallas import tpu as pltpu


def _bilstm_chunk_kernel(gxf_ref, gxb_ref, whhf_ref, whhb_ref,
                         outf_ref, outb_ref,
                         hf_ref, cf_ref, hb_ref, cb_ref, *, unroll):
    """One time chunk of both LSTM directions (bwd handled via reversed maps)."""
    t_chunk = gxf_ref.shape[0]
    H = whhf_ref.shape[0]

    @pl.when(pl.program_id(0) == 0)
    def _init():
        hf_ref[...] = jnp.zeros_like(hf_ref)
        cf_ref[...] = jnp.zeros_like(cf_ref)
        hb_ref[...] = jnp.zeros_like(hb_ref)
        cb_ref[...] = jnp.zeros_like(cb_ref)

    def cell(gates, c):
        i = jax.nn.sigmoid(gates[:, 0:H])
        f = jax.nn.sigmoid(gates[:, H:2 * H])
        g = jnp.tanh(gates[:, 2 * H:3 * H])
        o = jax.nn.sigmoid(gates[:, 3 * H:4 * H])
        c_new = f * c + i * g
        h_new = o * jnp.tanh(c_new)
        return h_new, c_new

    def step(s, carry):
        h_f, c_f, h_b, c_b = carry
        s_rev = t_chunk - 1 - s
        # Input projection + bias already folded into gx*; only h @ Whh is on
        # the sequential critical path.  Dots are strictly F32 x F32 -> F32.
        g_f = gxf_ref[s].astype(jnp.float32) + jnp.dot(
            h_f, whhf_ref[...], preferred_element_type=jnp.float32)
        g_b = gxb_ref[s_rev].astype(jnp.float32) + jnp.dot(
            h_b, whhb_ref[...], preferred_element_type=jnp.float32)
        # Two independent dependency chains interleaved for ILP on one TC.
        h_f, c_f = cell(g_f, c_f)
        h_b, c_b = cell(g_b, c_b)
        outf_ref[s] = h_f
        outb_ref[s_rev] = h_b
        return (h_f, c_f, h_b, c_b)

    carry = (hf_ref[...], cf_ref[...], hb_ref[...], cb_ref[...])
    carry = lax.fori_loop(0, t_chunk, step, carry, unroll=unroll)
    h_f, c_f, h_b, c_b = carry
    hf_ref[...] = h_f
    cf_ref[...] = c_f
    hb_ref[...] = h_b
    cb_ref[...] = c_b


def bilstm_forward(x_btd, params, *, t_chunk=32, gate_dtype=jnp.float32):
    """Bidirectional single-layer LSTM.  x_btd: (B, T, input_size), batch_first.

    gate_dtype controls only the *streamed* precomputed gate activations
    (HBM/VMEM bandwidth); all dots and all gate elementwise math are f32.
    """
    B, T, D = x_btd.shape
    H = params["whh_f"].shape[0]

    gate_bytes = jnp.dtype(gate_dtype).itemsize
    b_align = 8 if gate_bytes == 4 else 16
    Bp = ((B + b_align - 1) // b_align) * b_align        # sublane-aligned batch

    # --- VMEM policy: cap at ~75% of physical, size t_chunk to fit. ---
    try:
        phys_vmem = int(pltpu.get_tpu_info().vmem_capacity_bytes)
    except Exception:
        phys_vmem = 64 * 1024 * 1024                     # conservative (v7x per-TC)
    vmem_cap = (phys_vmem * 3) // 4                      # ~48 MiB v7x, ~96 MiB v5e/v6e

    def _vmem_need(tc):
        return (2 * 2 * tc * Bp * 4 * H * gate_bytes     # streamed gates (2 dirs, dbl-buf)
                + 2 * 2 * tc * Bp * H * 4                # f32 outputs   (2 dirs, dbl-buf)
                + 2 * 2 * H * 4 * H * 4                  # resident Whh f32 (dbl-buf)
                + 4 * Bp * H * 4)                        # h/c scratch

    t_chunk = max(1, min(int(t_chunk), T))
    while t_chunk > 8 and _vmem_need(t_chunk) > vmem_cap:
        t_chunk //= 2

    Tp = ((T + t_chunk - 1) // t_chunk) * t_chunk        # pad time to whole chunks
    num_chunks = Tp // t_chunk

    # --- Hoisted input projection: ONE fused f32 GEMM over x, time-major. ---
    x32 = x_btd.astype(jnp.float32)
    if Bp != B:
        x32 = jnp.pad(x32, ((0, Bp - B), (0, 0), (0, 0)))

    wih_cat = jnp.concatenate([params["wih_f"], params["wih_b"]],
                              axis=1).astype(jnp.float32)          # (D, 8H)
    b_cat = jnp.concatenate([params["b_f"], params["b_b"]],
                            axis=1).astype(jnp.float32)            # (1, 8H)
    gx = jnp.einsum("btd,dg->tbg", x32, wih_cat,
                    preferred_element_type=jnp.float32) + b_cat    # (T, Bp, 8H)
    gx_f = gx[:, :, :4 * H].astype(gate_dtype)
    gx_b = gx[:, :, 4 * H:].astype(gate_dtype)   # natural time order; kernel reads reversed
    if Tp != T:
        pad_t = ((0, Tp - T), (0, 0), (0, 0))    # zero pad at the END of both streams
        gx_f = jnp.pad(gx_f, pad_t)
        gx_b = jnp.pad(gx_b, pad_t)

    whh_f = params["whh_f"].astype(jnp.float32)
    whh_b = params["whh_b"].astype(jnp.float32)

    gate_spec_f = pl.BlockSpec((t_chunk, Bp, 4 * H), lambda t: (t, 0, 0))
    gate_spec_b = pl.BlockSpec((t_chunk, Bp, 4 * H),
                               lambda t: (num_chunks - 1 - t, 0, 0))
    w_spec = pl.BlockSpec((H, 4 * H), lambda t: (0, 0))            # resident weights
    out_spec_f = pl.BlockSpec((t_chunk, Bp, H), lambda t: (t, 0, 0))
    out_spec_b = pl.BlockSpec((t_chunk, Bp, H),
                              lambda t: (num_chunks - 1 - t, 0, 0))

    vmem_limit = int(min(max(2 * _vmem_need(t_chunk), 32 * 1024 * 1024), vmem_cap))

    kernel = functools.partial(_bilstm_chunk_kernel, unroll=max(1, min(4, t_chunk)))
    out_f, out_b = pl.pallas_call(
        kernel,
        out_shape=(jax.ShapeDtypeStruct((Tp, Bp, H), jnp.float32),
                   jax.ShapeDtypeStruct((Tp, Bp, H), jnp.float32)),
        grid_spec=pltpu.PrefetchScalarGridSpec(
            num_scalar_prefetch=0,
            grid=(num_chunks,),
            in_specs=[gate_spec_f, gate_spec_b, w_spec, w_spec],
            out_specs=[out_spec_f, out_spec_b],
            scratch_shapes=[pltpu.VMEM((Bp, H), jnp.float32)] * 4,
        ),
        compiler_params=pltpu.CompilerParams(
            dimension_semantics=("arbitrary",),   # time axis carries (h, c) state
            vmem_limit_bytes=vmem_limit,
        ),
    )(gx_f, gx_b, whh_f, whh_b)

    # Backward outputs are already in original time order (reversed out_spec).
    fwd = out_f[:T, :B]
    bwd = out_b[:T, :B]
    out_tbh = jnp.concatenate([fwd, bwd], axis=-1)     # (T, B, 2H)
    return jnp.transpose(out_tbh, (1, 0, 2))           # (B, T, 2H), batch_first


def lstm_reference(x_btd, params):
    """Pure-JAX reference (same math as torch.nn.LSTM, gate order i,f,g,o)."""
    B, T, D = x_btd.shape
    H = params["whh_f"].shape[0]

    def run_dir(wih, whh, b, reverse):
        def step(carry, x_t):
            h, c = carry
            gates = x_t @ wih + h @ whh + b
            i = jax.nn.sigmoid(gates[:, 0:H])
            f = jax.nn.sigmoid(gates[:, H:2 * H])
            g = jnp.tanh(gates[:, 2 * H:3 * H])
            o = jax.nn.sigmoid(gates[:, 3 * H:4 * H])
            c = f * c + i * g
            h = o * jnp.tanh(c)
            return (h, c), h

        xs = jnp.transpose(x_btd, (1, 0, 2))
        if reverse:
            xs = xs[::-1]
        init = (jnp.zeros((B, H), jnp.float32), jnp.zeros((B, H), jnp.float32))
        _, hs = lax.scan(step, init, xs)
        if reverse:
            hs = hs[::-1]
        return jnp.transpose(hs, (1, 0, 2))

    fwd = run_dir(params["wih_f"], params["whh_f"], params["b_f"], reverse=False)
    bwd = run_dir(params["wih_b"], params["whh_b"], params["b_b"], reverse=True)
    return jnp.concatenate([fwd, bwd], axis=-1)


def init_params(key, input_size, hidden_dim):
    """Deterministic init mimicking torch.nn.LSTM's U(-1/sqrt(H), 1/sqrt(H)).

    Weights pre-transposed for the kernel:
      wih: (input_size, 4H), whh: (H, 4H), b: (1, 4H) = b_ih + b_hh combined.
    """
    k = 1.0 / jnp.sqrt(jnp.float32(hidden_dim))
    keys = jax.random.split(key, 8)

    def u(kk, shape):
        return jax.random.uniform(kk, shape, jnp.float32, minval=-k, maxval=k)

    return {
        "wih_f": u(keys[0], (input_size, 4 * hidden_dim)),
        "whh_f": u(keys[1], (hidden_dim, 4 * hidden_dim)),
        "b_f": u(keys[2], (1, 4 * hidden_dim)) + u(keys[3], (1, 4 * hidden_dim)),
        "wih_b": u(keys[4], (input_size, 4 * hidden_dim)),
        "whh_b": u(keys[5], (hidden_dim, 4 * hidden_dim)),
        "b_b": u(keys[6], (1, 4 * hidden_dim)) + u(keys[7], (1, 4 * hidden_dim)),
    }


if __name__ == "__main__":
    B, T, INPUT_SIZE, HIDDEN = 2, 10, 16, 32   # small shapes consistent with the module

    key = jax.random.PRNGKey(0)
    kx, kp = jax.random.split(key)
    x = jax.random.normal(kx, (B, T, INPUT_SIZE), jnp.float32)
    params = init_params(kp, INPUT_SIZE, HIDDEN)

    ref = jax.block_until_ready(lstm_reference(x, params))

    # f32 gates, t_chunk=4 -> Tp=12: exercises multi-chunk streaming AND the
    # end-padded time steps for both directions (strict tolerance).
    out_f32 = jax.block_until_ready(
        bilstm_forward(x, params, t_chunk=4, gate_dtype=jnp.float32))
    assert out_f32.shape == (B, T, 2 * HIDDEN), out_f32.shape
    err32 = float(jnp.max(jnp.abs(out_f32 - ref)))
    assert jnp.allclose(out_f32, ref, atol=1e-5, rtol=1e-5), err32

    # bf16 streamed gates (bandwidth path); dots and elementwise stay f32.
    out_bf16 = jax.block_until_ready(
        bilstm_forward(x, params, t_chunk=5, gate_dtype=jnp.bfloat16))
    assert out_bf16.shape == (B, T, 2 * HIDDEN), out_bf16.shape
    err16 = float(jnp.max(jnp.abs(out_bf16 - ref)))
    assert jnp.allclose(out_bf16, ref, atol=5e-2, rtol=5e-2), err16

    print("KERNEL_OK")
</pallas_src>

<mosaic_0001>
module attributes {stable_mosaic.version = 11 : i64} {
  func.func @_bilstm_chunk_kernel(%arg0: i32, %arg1: memref<4x8x128xf32, #tpu.memory_space<vmem>>, %arg2: memref<4x8x128xf32, #tpu.memory_space<vmem>>, %arg3: memref<32x128xf32, #tpu.memory_space<vmem>>, %arg4: memref<32x128xf32, #tpu.memory_space<vmem>>, %arg5: memref<4x8x32xf32, #tpu.memory_space<vmem>>, %arg6: memref<4x8x32xf32, #tpu.memory_space<vmem>>, %arg7: memref<8x32xf32, #tpu.memory_space<vmem>>, %arg8: memref<8x32xf32, #tpu.memory_space<vmem>>, %arg9: memref<8x32xf32, #tpu.memory_space<vmem>>, %arg10: memref<8x32xf32, #tpu.memory_space<vmem>>) attributes {dimension_semantics = [#tpu.dimension_semantics<arbitrary>], iteration_bounds = array<i64: 3>, scalar_prefetch = 0 : i64, scratch_operands = 4 : i64, tpu.core_type = #tpu.core_type<tc>, window_params = [{transform_indices = @transform_0, window_bounds = array<i64: 4, 8, 128>}, {transform_indices = @transform_1, window_bounds = array<i64: 4, 8, 128>}, {pipeline_mode = #tpu.pipeline_mode<synchronous>, transform_indices = @transform_2, window_bounds = array<i64: 32, 128>}, {pipeline_mode = #tpu.pipeline_mode<synchronous>, transform_indices = @transform_3, window_bounds = array<i64: 32, 128>}, {transform_indices = @transform_4, window_bounds = array<i64: 4, 8, 32>}, {transform_indices = @transform_5, window_bounds = array<i64: 4, 8, 32>}]} {
    %c0_i32 = arith.constant 0 : i32
    %0 = arith.cmpi eq, %arg0, %c0_i32 : i32
    %1 = arith.extui %0 : i1 to i32
    %c0_i32_0 = arith.constant 0 : i32
    %2 = arith.cmpi ne, %1, %c0_i32_0 : i32
    scf.if %2 {
      %cst_100 = arith.constant 0.000000e+00 : f32
      %295 = vector.broadcast %cst_100 : f32 to vector<8x32xf32>
      %c0_101 = arith.constant 0 : index
      %c0_102 = arith.constant 0 : index
      %296 = vector.load %arg7[%c0_101, %c0_102] : memref<8x32xf32, #tpu.memory_space<vmem>>, vector<8x32xf32>
      tpu.vector_store %arg7[%c0_101, %c0_102], %295 {strides = array<i32>} : memref<8x32xf32, #tpu.memory_space<vmem>>, vector<8x32xf32>,
      %cst_103 = arith.constant 0.000000e+00 : f32
      %297 = vector.broadcast %cst_103 : f32 to vector<8x32xf32>
      %c0_104 = arith.constant 0 : index
      %c0_105 = arith.constant 0 : index
      %298 = vector.load %arg8[%c0_104, %c0_105] : memref<8x32xf32, #tpu.memory_space<vmem>>, vector<8x32xf32>
      tpu.vector_store %arg8[%c0_104, %c0_105], %297 {strides = array<i32>} : memref<8x32xf32, #tpu.memory_space<vmem>>, vector<8x32xf32>,
      %cst_106 = arith.constant 0.000000e+00 : f32
      %299 = vector.broadcast %cst_106 : f32 to vector<8x32xf32>
      %c0_107 = arith.constant 0 : index
      %c0_108 = arith.constant 0 : index
      %300 = vector.load %arg9[%c0_107, %c0_108] : memref<8x32xf32, #tpu.memory_space<vmem>>, vector<8x32xf32>
      tpu.vector_store %arg9[%c0_107, %c0_108], %299 {strides = array<i32>} : memref<8x32xf32, #tpu.memory_space<vmem>>, vector<8x32xf32>,
      %cst_109 = arith.constant 0.000000e+00 : f32
      %301 = vector.broadcast %cst_109 : f32 to vector<8x32xf32>
      %c0_110 = arith.constant 0 : index
      %c0_111 = arith.constant 0 : index
      %302 = vector.load %arg10[%c0_110, %c0_111] : memref<8x32xf32, #tpu.memory_space<vmem>>, vector<8x32xf32>
      tpu.vector_store %arg10[%c0_110, %c0_111], %301 {strides = array<i32>} : memref<8x32xf32, #tpu.memory_space<vmem>>, vector<8x32xf32>,
    } else {
    }
    %c0 = arith.constant 0 : index
    %c0_1 = arith.constant 0 : index
    %3 = vector.load %arg7[%c0, %c0_1] : memref<8x32xf32, #tpu.memory_space<vmem>>, vector<8x32xf32>
    %c0_2 = arith.constant 0 : index
    %c0_3 = arith.constant 0 : index
    %4 = vector.load %arg8[%c0_2, %c0_3] : memref<8x32xf32, #tpu.memory_space<vmem>>, vector<8x32xf32>
    %c0_4 = arith.constant 0 : index
    %c0_5 = arith.constant 0 : index
    %5 = vector.load %arg9[%c0_4, %c0_5] : memref<8x32xf32, #tpu.memory_space<vmem>>, vector<8x32xf32>
    %c0_6 = arith.constant 0 : index
    %c0_7 = arith.constant 0 : index
    %6 = vector.load %arg10[%c0_6, %c0_7] : memref<8x32xf32, #tpu.memory_space<vmem>>, vector<8x32xf32>
    %c0_i32_8 = arith.constant 0 : i32
    %c3_i32 = arith.constant 3 : i32
    %7 = arith.subi %c3_i32, %c0_i32_8 : i32
    %8 = arith.index_cast %c0_i32_8 : i32 to index
    %c0_9 = arith.constant 0 : index
    %c0_10 = arith.constant 0 : index
    %9 = vector.load %arg1[%8, %c0_9, %c0_10] : memref<4x8x128xf32, #tpu.memory_space<vmem>>, vector<1x8x128xf32>
    %10 = vector.shape_cast %9 : vector<1x8x128xf32> to vector<8x128xf32>
    %c0_11 = arith.constant 0 : index
    %c0_12 = arith.constant 0 : index
    %11 = vector.load %arg3[%c0_11, %c0_12] : memref<32x128xf32, #tpu.memory_space<vmem>>, vector<32x128xf32>
    %cst = arith.constant dense<0.000000e+00> : vector<8x128xf32>
    %12 = tpu.matmul %3, %11, %cst {dimension_numbers = #tpu.dot_dimension_numbers<[1], [0], [0], [1], [0, 0, 1, 1], [], []>} : vector<8x32xf32>, vector<32x128xf32>, vector<8x128xf32> -> vector<8x128xf32>
    %13 = arith.addf %10, %12 : vector<8x128xf32>
    %14 = arith.index_cast %7 : i32 to index
    %c0_13 = arith.constant 0 : index
    %c0_14 = arith.constant 0 : index
    %15 = vector.load %arg2[%14, %c0_13, %c0_14] : memref<4x8x128xf32, #tpu.memory_space<vmem>>, vector<1x8x128xf32>
    %16 = vector.shape_cast %15 : vector<1x8x128xf32> to vector<8x128xf32>
    %c0_15 = arith.constant 0 : index
    %c0_16 = arith.constant 0 : index
    %17 = vector.load %arg4[%c0_15, %c0_16] : memref<32x128xf32, #tpu.memory_space<vmem>>, vector<32x128xf32>
    %cst_17 = arith.constant dense<0.000000e+00> : vector<8x128xf32>
    %18 = tpu.matmul %5, %17, %cst_17 {dimension_numbers = #tpu.dot_dimension_numbers<[1], [0], [0], [1], [0, 0, 1, 1], [], []>} : vector<8x32xf32>, vector<32x128xf32>, vector<8x128xf32> -> vector<8x128xf32>
    %19 = arith.addf %16, %18 : vector<8x128xf32>
    %20 = vector.extract_strided_slice %13 {offsets = [0, 0], sizes = [8, 32], strides = [1, 1]} : vector<8x128xf32> to vector<8x32xf32>
    %21 = arith.negf %20 : vector<8x32xf32>
    %22 = math.exp %21 : vector<8x32xf32>
    %cst_18 = arith.constant 1.000000e+00 : f32
    %23 = vector.broadcast %cst_18 : f32 to vector<8x32xf32>
    %24 = arith.addf %23, %22 : vector<8x32xf32>
    %25 = arith.divf %23, %24 : vector<8x32xf32>
    %26 = vector.extract_strided_slice %13 {offsets = [0, 32], sizes = [8, 32], strides = [1, 1]} : vector<8x128xf32> to vector<8x32xf32>
    %27 = arith.negf %26 : vector<8x32xf32>
    %28 = math.exp %27 : vector<8x32xf32>
    %cst_19 = arith.constant 1.000000e+00 : f32
    %29 = vector.broadcast %cst_19 : f32 to vector<8x32xf32>
    %30 = arith.addf %29, %28 : vector<8x32xf32>
    %31 = arith.divf %29, %30 : vector<8x32xf32>
    %32 = vector.extract_strided_slice %13 {offsets = [0, 64], sizes = [8, 32], strides = [1, 1]} : vector<8x128xf32> to vector<8x32xf32>
    %33 = math.tanh %32 : vector<8x32xf32>
    %34 = vector.extract_strided_slice %13 {offsets = [0, 96], sizes = [8, 32], strides = [1, 1]} : vector<8x128xf32> to vector<8x32xf32>
    %35 = arith.negf %34 : vector<8x32xf32>
    %36 = math.exp %35 : vector<8x32xf32>
    %cst_20 = arith.constant 1.000000e+00 : f32
    %37 = vector.broadcast %cst_20 : f32 to vector<8x32xf32>
    %38 = arith.addf %37, %36 : vector<8x32xf32>
    %39 = arith.divf %37, %38 : vector<8x32xf32>
    %40 = arith.mulf %31, %4 : vector<8x32xf32>
    %41 = arith.mulf %25, %33 : vector<8x32xf32>
    %42 = arith.addf %40, %41 : vector<8x32xf32>
    %43 = math.tanh %42 : vector<8x32xf32>
    %44 = arith.mulf %39, %43 : vector<8x32xf32>
    %45 = vector.extract_strided_slice %19 {offsets = [0, 0], sizes = [8, 32], strides = [1, 1]} : vector<8x128xf32> to vector<8x32xf32>
    %46 = arith.negf %45 : vector<8x32xf32>
    %47 = math.exp %46 : vector<8x32xf32>
    %cst_21 = arith.constant 1.000000e+00 : f32
    %48 = vector.broadcast %cst_21 : f32 to vector<8x32xf32>
    %49 = arith.addf %48, %47 : vector<8x32xf32>
    %50 = arith.divf %48, %49 : vector<8x32xf32>
    %51 = vector.extract_strided_slice %19 {offsets = [0, 32], sizes = [8, 32], strides = [1, 1]} : vector<8x128xf32> to vector<8x32xf32>
    %52 = arith.negf %51 : vector<8x32xf32>
    %53 = math.exp %52 : vector<8x32xf32>
    %cst_22 = arith.constant 1.000000e+00 : f32
    %54 = vector.broadcast %cst_22 : f32 to vector<8x32xf32>
    %55 = arith.addf %54, %53 : vector<8x32xf32>
    %56 = arith.divf %54, %55 : vector<8x32xf32>
    %57 = vector.extract_strided_slice %19 {offsets = [0, 64], sizes = [8, 32], strides = [1, 1]} : vector<8x128xf32> to vector<8x32xf32>
    %58 = math.tanh %57 : vector<8x32xf32>
    %59 = vector.extract_strided_slice %19 {offsets = [0, 96], sizes = [8, 32], strides = [1, 1]} : vector<8x128xf32> to vector<8x32xf32>
    %60 = arith.negf %59 : vector<8x32xf32>
    %61 = math.exp %60 : vector<8x32xf32>
    %cst_23 = arith.constant 1.000000e+00 : f32
    %62 = vector.broadcast %cst_23 : f32 to vector<8x32xf32>
    %63 = arith.addf %62, %61 : vector<8x32xf32>
    %64 = arith.divf %62, %63 : vector<8x32xf32>
    %65 = arith.mulf %56, %6 : vector<8x32xf32>
    %66 = arith.mulf %50, %58 : vector<8x32xf32>
    %67 = arith.addf %65, %66 : vector<8x32xf32>
    %68 = math.tanh %67 : vector<8x32xf32>
    %69 = arith.mulf %64, %68 : vector<8x32xf32>
    %70 = arith.index_cast %c0_i32_8 : i32 to index
    %c0_24 = arith.constant 0 : index
    %c0_25 = arith.constant 0 : index
    %71 = vector.load %arg5[%70, %c0_24, %c0_25] : memref<4x8x32xf32, #tpu.memory_space<vmem>>, vector<1x8x32xf32>
    %72 = vector.shape_cast %71 : vector<1x8x32xf32> to vector<8x32xf32>
    %73 = vector.shape_cast %44 : vector<8x32xf32> to vector<1x8x32xf32>
    tpu.vector_store %arg5[%70, %c0_24, %c0_25], %73 {strides = array<i32>} : memref<4x8x32xf32, #tpu.memory_space<vmem>>, vector<1x8x32xf32>,
    %74 = arith.index_cast %7 : i32 to index
    %c0_26 = arith.constant 0 : index
    %c0_27 = arith.constant 0 : index
    %75 = vector.load %arg6[%74, %c0_26, %c0_27] : memref<4x8x32xf32, #tpu.memory_space<vmem>>, vector<1x8x32xf32>
    %76 = vector.shape_cast %75 : vector<1x8x32xf32> to vector<8x32xf32>
    %77 = vector.shape_cast %69 : vector<8x32xf32> to vector<1x8x32xf32>
    tpu.vector_store %arg6[%74, %c0_26, %c0_27], %77 {strides = array<i32>} : memref<4x8x32xf32, #tpu.memory_space<vmem>>, vector<1x8x32xf32>,
    %c1_i32 = arith.constant 1 : i32
    %c3_i32_28 = arith.constant 3 : i32
    %78 = arith.subi %c3_i32_28, %c1_i32 : i32
    %79 = arith.index_cast %c1_i32 : i32 to index
    %c0_29 = arith.constant 0 : index
    %c0_30 = arith.constant 0 : index
    %80 = vector.load %arg1[%79, %c0_29, %c0_30] : memref<4x8x128xf32, #tpu.memory_space<vmem>>, vector<1x8x128xf32>
    %81 = vector.shape_cast %80 : vector<1x8x128xf32> to vector<8x128xf32>
    %c0_31 = arith.constant 0 : index
    %c0_32 = arith.constant 0 : index
    %82 = vector.load %arg3[%c0_31, %c0_32] : memref<32x128xf32, #tpu.memory_space<vmem>>, vector<32x128xf32>
    %cst_33 = arith.constant dense<0.000000e+00> : vector<8x128xf32>
    %83 = tpu.matmul %44, %82, %cst_33 {dimension_numbers = #tpu.dot_dimension_numbers<[1], [0], [0], [1], [0, 0, 1, 1], [], []>} : vector<8x32xf32>, vector<32x128xf32>, vector<8x128xf32> -> vector<8x128xf32>
    %84 = arith.addf %81, %83 : vector<8x128xf32>
    %85 = arith.index_cast %78 : i32 to index
    %c0_34 = arith.constant 0 : index
    %c0_35 = arith.constant 0 : index
    %86 = vector.load %arg2[%85, %c0_34, %c0_35] : memref<4x8x128xf32, #tpu.memory_space<vmem>>, vector<1x8x128xf32>
    %87 = vector.shape_cast %86 : vector<1x8x128xf32> to vector<8x128xf32>
    %c0_36 = arith.constant 0 : index
    %c0_37 = arith.constant 0 : index
    %88 = vector.load %arg4[%c0_36, %c0_37] : memref<32x128xf32, #tpu.memory_space<vmem>>, vector<32x128xf32>
    %cst_38 = arith.constant dense<0.000000e+00> : vector<8x128xf32>
    %89 = tpu.matmul %69, %88, %cst_38 {dimension_numbers = #tpu.dot_dimension_numbers<[1], [0], [0], [1], [0, 0, 1, 1], [], []>} : vector<8x32xf32>, vector<32x128xf32>, vector<8x128xf32> -> vector<8x128xf32>
    %90 = arith.addf %87, %89 : vector<8x128xf32>
    %91 = vector.extract_strided_slice %84 {offsets = [0, 0], sizes = [8, 32], strides = [1, 1]} : vector<8x128xf32> to vector<8x32xf32>
    %92 = arith.negf %91 : vector<8x32xf32>
    %93 = math.exp %92 : vector<8x32xf32>
    %cst_39 = arith.constant 1.000000e+00 : f32
    %94 = vector.broadcast %cst_39 : f32 to vector<8x32xf32>
    %95 = arith.addf %94, %93 : vector<8x32xf32>
    %96 = arith.divf %94, %95 : vector<8x32xf32>
    %97 = vector.extract_strided_slice %84 {offsets = [0, 32], sizes = [8, 32], strides = [1, 1]} : vector<8x128xf32> to vector<8x32xf32>
    %98 = arith.negf %97 : vector<8x32xf32>
    %99 = math.exp %98 : vector<8x32xf32>
    %cst_40 = arith.constant 1.000000e+00 : f32
    %100 = vector.broadcast %cst_40 : f32 to vector<8x32xf32>
    %101 = arith.addf %100, %99 : vector<8x32xf32>
    %102 = arith.divf %100, %101 : vector<8x32xf32>
    %103 = vector.extract_strided_slice %84 {offsets = [0, 64], sizes = [8, 32], strides = [1, 1]} : vector<8x128xf32> to vector<8x32xf32>
    %104 = math.tanh %103 : vector<8x32xf32>
    %105 = vector.extract_strided_slice %84 {offsets = [0, 96], sizes = [8, 32], strides = [1, 1]} : vector<8x128xf32> to vector<8x32xf32>
    %106 = arith.negf %105 : vector<8x32xf32>
    %107 = math.exp %106 : vector<8x32xf32>
    %cst_41 = arith.constant 1.000000e+00 : f32
    %108 = vector.broadcast %cst_41 : f32 to vector<8x32xf32>
    %109 = arith.addf %108, %107 : vector<8x32xf32>
    %110 = arith.divf %108, %109 : vector<8x32xf32>
    %111 = arith.mulf %102, %42 : vector<8x32xf32>
    %112 = arith.mulf %96, %104 : vector<8x32xf32>
    %113 = arith.addf %111, %112 : vector<8x32xf32>
    %114 = math.tanh %113 : vector<8x32xf32>
    %115 = arith.mulf %110, %114 : vector<8x32xf32>
    %116 = vector.extract_strided_slice %90 {offsets = [0, 0], sizes = [8, 32], strides = [1, 1]} : vector<8x128xf32> to vector<8x32xf32>
    %117 = arith.negf %116 : vector<8x32xf32>
    %118 = math.exp %117 : vector<8x32xf32>
    %cst_42 = arith.constant 1.000000e+00 : f32
    %119 = vector.broadcast %cst_42 : f32 to vector<8x32xf32>
    %120 = arith.addf %119, %118 : vector<8x32xf32>
    %121 = arith.divf %119, %120 : vector<8x32xf32>
    %122 = vector.extract_strided_slice %90 {offsets = [0, 32], sizes = [8, 32], strides = [1, 1]} : vector<8x128xf32> to vector<8x32xf32>
    %123 = arith.negf %122 : vector<8x32xf32>
    %124 = math.exp %123 : vector<8x32xf32>
    %cst_43 = arith.constant 1.000000e+00 : f32
    %125 = vector.broadcast %cst_43 : f32 to vector<8x32xf32>
    %126 = arith.addf %125, %124 : vector<8x32xf32>
    %127 = arith.divf %125, %126 : vector<8x32xf32>
    %128 = vector.extract_strided_slice %90 {offsets = [0, 64], sizes = [8, 32], strides = [1, 1]} : vector<8x128xf32> to vector<8x32xf32>
    %129 = math.tanh %128 : vector<8x32xf32>
    %130 = vector.extract_strided_slice %90 {offsets = [0, 96], sizes = [8, 32], strides = [1, 1]} : vector<8x128xf32> to vector<8x32xf32>
    %131 = arith.negf %130 : vector<8x32xf32>
    %132 = math.exp %131 : vector<8x32xf32>
    %cst_44 = arith.constant 1.000000e+00 : f32
    %133 = vector.broadcast %cst_44 : f32 to vector<8x32xf32>
    %134 = arith.addf %133, %132 : vector<8x32xf32>
    %135 = arith.divf %133, %134 : vector<8x32xf32>
    %136 = arith.mulf %127, %67 : vector<8x32xf32>
    %137 = arith.mulf %121, %129 : vector<8x32xf32>
    %138 = arith.addf %136, %137 : vector<8x32xf32>
    %139 = math.tanh %138 : vector<8x32xf32>
    %140 = arith.mulf %135, %139 : vector<8x32xf32>
    %141 = arith.index_cast %c1_i32 : i32 to index
    %c0_45 = arith.constant 0 : index
    %c0_46 = arith.constant 0 : index
    %142 = vector.load %arg5[%141, %c0_45, %c0_46] : memref<4x8x32xf32, #tpu.memory_space<vmem>>, vector<1x8x32xf32>
    %143 = vector.shape_cast %142 : vector<1x8x32xf32> to vector<8x32xf32>
    %144 = vector.shape_cast %115 : vector<8x32xf32> to vector<1x8x32xf32>
    tpu.vector_store %arg5[%141, %c0_45, %c0_46], %144 {strides = array<i32>} : memref<4x8x32xf32, #tpu.memory_space<vmem>>, vector<1x8x32xf32>,
    %145 = arith.index_cast %78 : i32 to index
    %c0_47 = arith.constant 0 : index
    %c0_48 = arith.constant 0 : index
    %146 = vector.load %arg6[%145, %c0_47, %c0_48] : memref<4x8x32xf32, #tpu.memory_space<vmem>>, vector<1x8x32xf32>
    %147 = vector.shape_cast %146 : vector<1x8x32xf32> to vector<8x32xf32>
    %148 = vector.shape_cast %140 : vector<8x32xf32> to vector<1x8x32xf32>
    tpu.vector_store %arg6[%145, %c0_47, %c0_48], %148 {strides = array<i32>} : memref<4x8x32xf32, #tpu.memory_space<vmem>>, vector<1x8x32xf32>,
    %c2_i32 = arith.constant 2 : i32
    %c3_i32_49 = arith.constant 3 : i32
    %149 = arith.subi %c3_i32_49, %c2_i32 : i32
    %150 = arith.index_cast %c2_i32 : i32 to index
    %c0_50 = arith.constant 0 : index
    %c0_51 = arith.constant 0 : index
    %151 = vector.load %arg1[%150, %c0_50, %c0_51] : memref<4x8x128xf32, #tpu.memory_space<vmem>>, vector<1x8x128xf32>
    %152 = vector.shape_cast %151 : vector<1x8x128xf32> to vector<8x128xf32>
    %c0_52 = arith.constant 0 : index
    %c0_53 = arith.constant 0 : index
    %153 = vector.load %arg3[%c0_52, %c0_53] : memref<32x128xf32, #tpu.memory_space<vmem>>, vector<32x128xf32>
    %cst_54 = arith.constant dense<0.000000e+00> : vector<8x128xf32>
    %154 = tpu.matmul %115, %153, %cst_54 {dimension_numbers = #tpu.dot_dimension_numbers<[1], [0], [0], [1], [0, 0, 1, 1], [], []>} : vector<8x32xf32>, vector<32x128xf32>, vector<8x128xf32> -> vector<8x128xf32>
    %155 = arith.addf %152, %154 : vector<8x128xf32>
    %156 = arith.index_cast %149 : i32 to index
    %c0_55 = arith.constant 0 : index
    %c0_56 = arith.constant 0 : index
    %157 = vector.load %arg2[%156, %c0_55, %c0_56] : memref<4x8x128xf32, #tpu.memory_space<vmem>>, vector<1x8x128xf32>
    %158 = vector.shape_cast %157 : vector<1x8x128xf32> to vector<8x128xf32>
    %c0_57 = arith.constant 0 : index
    %c0_58 = arith.constant 0 : index
    %159 = vector.load %arg4[%c0_57, %c0_58] : memref<32x128xf32, #tpu.memory_space<vmem>>, vector<32x128xf32>
    %cst_59 = arith.constant dense<0.000000e+00> : vector<8x128xf32>
    %160 = tpu.matmul %140, %159, %cst_59 {dimension_numbers = #tpu.dot_dimension_numbers<[1], [0], [0], [1], [0, 0, 1, 1], [], []>} : vector<8x32xf32>, vector<32x128xf32>, vector<8x128xf32> -> vector<8x128xf32>
    %161 = arith.addf %158, %160 : vector<8x128xf32>
    %162 = vector.extract_strided_slice %155 {offsets = [0, 0], sizes = [8, 32], strides = [1, 1]} : vector<8x128xf32> to vector<8x32xf32>
    %163 = arith.negf %162 : vector<8x32xf32>
    %164 = math.exp %163 : vector<8x32xf32>
    %cst_60 = arith.constant 1.000000e+00 : f32
    %165 = vector.broadcast %cst_60 : f32 to vector<8x32xf32>
    %166 = arith.addf %165, %164 : vector<8x32xf32>
    %167 = arith.divf %165, %166 : vector<8x32xf32>
    %168 = vector.extract_strided_slice %155 {offsets = [0, 32], sizes = [8, 32], strides = [1, 1]} : vector<8x128xf32> to vector<8x32xf32>
    %169 = arith.negf %168 : vector<8x32xf32>
    %170 = math.exp %169 : vector<8x32xf32>
    %cst_61 = arith.constant 1.000000e+00 : f32
    %171 = vector.broadcast %cst_61 : f32 to vector<8x32xf32>
    %172 = arith.addf %171, %170 : vector<8x32xf32>
    %173 = arith.divf %171, %172 : vector<8x32xf32>
    %174 = vector.extract_strided_slice %155 {offsets = [0, 64], sizes = [8, 32], strides = [1, 1]} : vector<8x128xf32> to vector<8x32xf32>
    %175 = math.tanh %174 : vector<8x32xf32>
    %176 = vector.extract_strided_slice %155 {offsets = [0, 96], sizes = [8, 32], strides = [1, 1]} : vector<8x128xf32> to vector<8x32xf32>
    %177 = arith.negf %176 : vector<8x32xf32>
    %178 = math.exp %177 : vector<8x32xf32>
    %cst_62 = arith.constant 1.000000e+00 : f32
    %179 = vector.broadcast %cst_62 : f32 to vector<8x32xf32>
    %180 = arith.addf %179, %178 : vector<8x32xf32>
    %181 = arith.divf %179, %180 : vector<8x32xf32>
    %182 = arith.mulf %173, %113 : vector<8x32xf32>
    %183 = arith.mulf %167, %175 : vector<8x32xf32>
    %184 = arith.addf %182, %183 : vector<8x32xf32>
    %185 = math.tanh %184 : vector<8x32xf32>
    %186 = arith.mulf %181, %185 : vector<8x32xf32>
    %187 = vector.extract_strided_slice %161 {offsets = [0, 0], sizes = [8, 32], strides = [1, 1]} : vector<8x128xf32> to vector<8x32xf32>
    %188 = arith.negf %187 : vector<8x32xf32>
    %189 = math.exp %188 : vector<8x32xf32>
    %cst_63 = arith.constant 1.000000e+00 : f32
    %190 = vector.broadcast %cst_63 : f32 to vector<8x32xf32>
    %191 = arith.addf %190, %189 : vector<8x32xf32>
    %192 = arith.divf %190, %191 : vector<8x32xf32>
    %193 = vector.extract_strided_slice %161 {offsets = [0, 32], sizes = [8, 32], strides = [1, 1]} : vector<8x128xf32> to vector<8x32xf32>
    %194 = arith.negf %193 : vector<8x32xf32>
    %195 = math.exp %194 : vector<8x32xf32>
    %cst_64 = arith.constant 1.000000e+00 : f32
    %196 = vector.broadcast %cst_64 : f32 to vector<8x32xf32>
    %197 = arith.addf %196, %195 : vector<8x32xf32>
    %198 = arith.divf %196, %197 : vector<8x32xf32>
    %199 = vector.extract_strided_slice %161 {offsets = [0, 64], sizes = [8, 32], strides = [1, 1]} : vector<8x128xf32> to vector<8x32xf32>
    %200 = math.tanh %199 : vector<8x32xf32>
    %201 = vector.extract_strided_slice %161 {offsets = [0, 96], sizes = [8, 32], strides = [1, 1]} : vector<8x128xf32> to vector<8x32xf32>
    %202 = arith.negf %201 : vector<8x32xf32>
    %203 = math.exp %202 : vector<8x32xf32>
    %cst_65 = arith.constant 1.000000e+00 : f32
    %204 = vector.broadcast %cst_65 : f32 to vector<8x32xf32>
    %205 = arith.addf %204, %203 : vector<8x32xf32>
    %206 = arith.divf %204, %205 : vector<8x32xf32>
    %207 = arith.mulf %198, %138 : vector<8x32xf32>
    %208 = arith.mulf %192, %200 : vector<8x32xf32>
    %209 = arith.addf %207, %208 : vector<8x32xf32>
    %210 = math.tanh %209 : vector<8x32xf32>
    %211 = arith.mulf %206, %210 : vector<8x32xf32>
    %212 = arith.index_cast %c2_i32 : i32 to index
    %c0_66 = arith.constant 0 : index
    %c0_67 = arith.constant 0 : index
    %213 = vector.load %arg5[%212, %c0_66, %c0_67] : memref<4x8x32xf32, #tpu.memory_space<vmem>>, vector<1x8x32xf32>
    %214 = vector.shape_cast %213 : vector<1x8x32xf32> to vector<8x32xf32>
    %215 = vector.shape_cast %186 : vector<8x32xf32> to vector<1x8x32xf32>
    tpu.vector_store %arg5[%212, %c0_66, %c0_67], %215 {strides = array<i32>} : memref<4x8x32xf32, #tpu.memory_space<vmem>>, vector<1x8x32xf32>,
    %216 = arith.index_cast %149 : i32 to index
    %c0_68 = arith.constant 0 : index
    %c0_69 = arith.constant 0 : index
    %217 = vector.load %arg6[%216, %c0_68, %c0_69] : memref<4x8x32xf32, #tpu.memory_space<vmem>>, vector<1x8x32xf32>
    %218 = vector.shape_cast %217 : vector<1x8x32xf32> to vector<8x32xf32>
    %219 = vector.shape_cast %211 : vector<8x32xf32> to vector<1x8x32xf32>
    tpu.vector_store %arg6[%216, %c0_68, %c0_69], %219 {strides = array<i32>} : memref<4x8x32xf32, #tpu.memory_space<vmem>>, vector<1x8x32xf32>,
    %c3_i32_70 = arith.constant 3 : i32
    %c3_i32_71 = arith.constant 3 : i32
    %220 = arith.subi %c3_i32_71, %c3_i32_70 : i32
    %221 = arith.index_cast %c3_i32_70 : i32 to index
    %c0_72 = arith.constant 0 : index
    %c0_73 = arith.constant 0 : index
    %222 = vector.load %arg1[%221, %c0_72, %c0_73] : memref<4x8x128xf32, #tpu.memory_space<vmem>>, vector<1x8x128xf32>
    %223 = vector.shape_cast %222 : vector<1x8x128xf32> to vector<8x128xf32>
    %c0_74 = arith.constant 0 : index
    %c0_75 = arith.constant 0 : index
    %224 = vector.load %arg3[%c0_74, %c0_75] : memref<32x128xf32, #tpu.memory_space<vmem>>, vector<32x128xf32>
    %cst_76 = arith.constant dense<0.000000e+00> : vector<8x128xf32>
    %225 = tpu.matmul %186, %224, %cst_76 {dimension_numbers = #tpu.dot_dimension_numbers<[1], [0], [0], [1], [0, 0, 1, 1], [], []>} : vector<8x32xf32>, vector<32x128xf32>, vector<8x128xf32> -> vector<8x128xf32>
    %226 = arith.addf %223, %225 : vector<8x128xf32>
    %227 = arith.index_cast %220 : i32 to index
    %c0_77 = arith.constant 0 : index
    %c0_78 = arith.constant 0 : index
    %228 = vector.load %arg2[%227, %c0_77, %c0_78] : memref<4x8x128xf32, #tpu.memory_space<vmem>>, vector<1x8x128xf32>
    %229 = vector.shape_cast %228 : vector<1x8x128xf32> to vector<8x128xf32>
    %c0_79 = arith.constant 0 : index
    %c0_80 = arith.constant 0 : index
    %230 = vector.load %arg4[%c0_79, %c0_80] : memref<32x128xf32, #tpu.memory_space<vmem>>, vector<32x128xf32>
    %cst_81 = arith.constant dense<0.000000e+00> : vector<8x128xf32>
    %231 = tpu.matmul %211, %230, %cst_81 {dimension_numbers = #tpu.dot_dimension_numbers<[1], [0], [0], [1], [0, 0, 1, 1], [], []>} : vector<8x32xf32>, vector<32x128xf32>, vector<8x128xf32> -> vector<8x128xf32>
    %232 = arith.addf %229, %231 : vector<8x128xf32>
    %233 = vector.extract_strided_slice %226 {offsets = [0, 0], sizes = [8, 32], strides = [1, 1]} : vector<8x128xf32> to vector<8x32xf32>
    %234 = arith.negf %233 : vector<8x32xf32>
    %235 = math.exp %234 : vector<8x32xf32>
    %cst_82 = arith.constant 1.000000e+00 : f32
    %236 = vector.broadcast %cst_82 : f32 to vector<8x32xf32>
    %237 = arith.addf %236, %235 : vector<8x32xf32>
    %238 = arith.divf %236, %237 : vector<8x32xf32>
    %239 = vector.extract_strided_slice %226 {offsets = [0, 32], sizes = [8, 32], strides = [1, 1]} : vector<8x128xf32> to vector<8x32xf32>
    %240 = arith.negf %239 : vector<8x32xf32>
    %241 = math.exp %240 : vector<8x32xf32>
    %cst_83 = arith.constant 1.000000e+00 : f32
    %242 = vector.broadcast %cst_83 : f32 to vector<8x32xf32>
    %243 = arith.addf %242, %241 : vector<8x32xf32>
    %244 = arith.divf %242, %243 : vector<8x32xf32>
    %245 = vector.extract_strided_slice %226 {offsets = [0, 64], sizes = [8, 32], strides = [1, 1]} : vector<8x128xf32> to vector<8x32xf32>
    %246 = math.tanh %245 : vector<8x32xf32>
    %247 = vector.extract_strided_slice %226 {offsets = [0, 96], sizes = [8, 32], strides = [1, 1]} : vector<8x128xf32> to vector<8x32xf32>
    %248 = arith.negf %247 : vector<8x32xf32>
    %249 = math.exp %248 : vector<8x32xf32>
    %cst_84 = arith.constant 1.000000e+00 : f32
    %250 = vector.broadcast %cst_84 : f32 to vector<8x32xf32>
    %251 = arith.addf %250, %249 : vector<8x32xf32>
    %252 = arith.divf %250, %251 : vector<8x32xf32>
    %253 = arith.mulf %244, %184 : vector<8x32xf32>
    %254 = arith.mulf %238, %246 : vector<8x32xf32>
    %255 = arith.addf %253, %254 : vector<8x32xf32>
    %256 = math.tanh %255 : vector<8x32xf32>
    %257 = arith.mulf %252, %256 : vector<8x32xf32>
    %258 = vector.extract_strided_slice %232 {offsets = [0, 0], sizes = [8, 32], strides = [1, 1]} : vector<8x128xf32> to vector<8x32xf32>
    %259 = arith.negf %258 : vector<8x32xf32>
    %260 = math.exp %259 : vector<8x32xf32>
    %cst_85 = arith.constant 1.000000e+00 : f32
    %261 = vector.broadcast %cst_85 : f32 to vector<8x32xf32>
    %262 = arith.addf %261, %260 : vector<8x32xf32>
    %263 = arith.divf %261, %262 : vector<8x32xf32>
    %264 = vector.extract_strided_slice %232 {offsets = [0, 32], sizes = [8, 32], strides = [1, 1]} : vector<8x128xf32> to vector<8x32xf32>
    %265 = arith.negf %264 : vector<8x32xf32>
    %266 = math.exp %265 : vector<8x32xf32>
    %cst_86 = arith.constant 1.000000e+00 : f32
    %267 = vector.broadcast %cst_86 : f32 to vector<8x32xf32>
    %268 = arith.addf %267, %266 : vector<8x32xf32>
    %269 = arith.divf %267, %268 : vector<8x32xf32>
    %270 = vector.extract_strided_slice %232 {offsets = [0, 64], sizes = [8, 32], strides = [1, 1]} : vector<8x128xf32> to vector<8x32xf32>
    %271 = math.tanh %270 : vector<8x32xf32>
    %272 = vector.extract_strided_slice %232 {offsets = [0, 96], sizes = [8, 32], strides = [1, 1]} : vector<8x128xf32> to vector<8x32xf32>
    %273 = arith.negf %272 : vector<8x32xf32>
    %274 = math.exp %273 : vector<8x32xf32>
    %cst_87 = arith.constant 1.000000e+00 : f32
    %275 = vector.broadcast %cst_87 : f32 to vector<8x32xf32>
    %276 = arith.addf %275, %274 : vector<8x32xf32>
    %277 = arith.divf %275, %276 : vector<8x32xf32>
    %278 = arith.mulf %269, %209 : vector<8x32xf32>
    %279 = arith.mulf %263, %271 : vector<8x32xf32>
    %280 = arith.addf %278, %279 : vector<8x32xf32>
    %281 = math.tanh %280 : vector<8x32xf32>
    %282 = arith.mulf %277, %281 : vector<8x32xf32>
    %283 = arith.index_cast %c3_i32_70 : i32 to index
    %c0_88 = arith.constant 0 : index
    %c0_89 = arith.constant 0 : index
    %284 = vector.load %arg5[%283, %c0_88, %c0_89] : memref<4x8x32xf32, #tpu.memory_space<vmem>>, vector<1x8x32xf32>
    %285 = vector.shape_cast %284 : vector<1x8x32xf32> to vector<8x32xf32>
    %286 = vector.shape_cast %257 : vector<8x32xf32> to vector<1x8x32xf32>
    tpu.vector_store %arg5[%283, %c0_88, %c0_89], %286 {strides = array<i32>} : memref<4x8x32xf32, #tpu.memory_space<vmem>>, vector<1x8x32xf32>,
    %287 = arith.index_cast %220 : i32 to index
    %c0_90 = arith.constant 0 : index
    %c0_91 = arith.constant 0 : index
    %288 = vector.load %arg6[%287, %c0_90, %c0_91] : memref<4x8x32xf32, #tpu.memory_space<vmem>>, vector<1x8x32xf32>
    %289 = vector.shape_cast %288 : vector<1x8x32xf32> to vector<8x32xf32>
    %290 = vector.shape_cast %282 : vector<8x32xf32> to vector<1x8x32xf32>
    tpu.vector_store %arg6[%287, %c0_90, %c0_91], %290 {strides = array<i32>} : memref<4x8x32xf32, #tpu.memory_space<vmem>>, vector<1x8x32xf32>,
    %c4_i32 = arith.constant 4 : i32
    %c0_92 = arith.constant 0 : index
    %c0_93 = arith.constant 0 : index
    %291 = vector.load %arg7[%c0_92, %c0_93] : memref<8x32xf32, #tpu.memory_space<vmem>>, vector<8x32xf32>
    tpu.vector_store %arg7[%c0_92, %c0_93], %257 {strides = array<i32>} : memref<8x32xf32, #tpu.memory_space<vmem>>, vector<8x32xf32>,
    %c0_94 = arith.constant 0 : index
    %c0_95 = arith.constant 0 : index
    %292 = vector.load %arg8[%c0_94, %c0_95] : memref<8x32xf32, #tpu.memory_space<vmem>>, vector<8x32xf32>
    tpu.vector_store %arg8[%c0_94, %c0_95], %255 {strides = array<i32>} : memref<8x32xf32, #tpu.memory_space<vmem>>, vector<8x32xf32>,
    %c0_96 = arith.constant 0 : index
    %c0_97 = arith.constant 0 : index
    %293 = vector.load %arg9[%c0_96, %c0_97] : memref<8x32xf32, #tpu.memory_space<vmem>>, vector<8x32xf32>
    tpu.vector_store %arg9[%c0_96, %c0_97], %282 {strides = array<i32>} : memref<8x32xf32, #tpu.memory_space<vmem>>, vector<8x32xf32>,
    %c0_98 = arith.constant 0 : index
    %c0_99 = arith.constant 0 : index
    %294 = vector.load %arg10[%c0_98, %c0_99] : memref<8x32xf32, #tpu.memory_space<vmem>>, vector<8x32xf32>
    tpu.vector_store %arg10[%c0_98, %c0_99], %280 {strides = array<i32>} : memref<8x32xf32, #tpu.memory_space<vmem>>, vector<8x32xf32>,
    return
  }
  func.func @transform_0(%arg0: i32) -> (i32, i32, i32) {
    %c0_i32 = arith.constant 0 : i32
    %c0_i32_0 = arith.constant 0 : i32
    %c0_i32_1 = arith.constant 0 : i32
    return %arg0, %c0_i32, %c0_i32_0 : i32, i32, i32
  }
  func.func @transform_1(%arg0: i32) -> (i32, i32, i32) {
    %c2_i32 = arith.constant 2 : i32
    %0 = arith.subi %c2_i32, %arg0 : i32
    %c0_i32 = arith.constant 0 : i32
    %c0_i32_0 = arith.constant 0 : i32
    %c0_i32_1 = arith.constant 0 : i32
    return %0, %c0_i32, %c0_i32_0 : i32, i32, i32
  }
  func.func @transform_2(%arg0: i32) -> (i32, i32) {
    %c0_i32 = arith.constant 0 : i32
    %c0_i32_0 = arith.constant 0 : i32
    %c0_i32_1 = arith.constant 0 : i32
    return %c0_i32, %c0_i32_0 : i32, i32
  }
  func.func @transform_3(%arg0: i32) -> (i32, i32) {
    %c0_i32 = arith.constant 0 : i32
    %c0_i32_0 = arith.constant 0 : i32
    %c0_i32_1 = arith.constant 0 : i32
    return %c0_i32, %c0_i32_0 : i32, i32
  }
  func.func @transform_4(%arg0: i32) -> (i32, i32, i32) {
    %c0_i32 = arith.constant 0 : i32
    %c0_i32_0 = arith.constant 0 : i32
    %c0_i32_1 = arith.constant 0 : i32
    return %arg0, %c0_i32, %c0_i32_0 : i32, i32, i32
  }
  func.func @transform_5(%arg0: i32) -> (i32, i32, i32) {
    %c2_i32 = arith.constant 2 : i32
    %0 = arith.subi %c2_i32, %arg0 : i32
    %c0_i32 = arith.constant 0 : i32
    %c0_i32_0 = arith.constant 0 : i32
    %c0_i32_1 = arith.constant 0 : i32
    return %0, %c0_i32, %c0_i32_0 : i32, i32, i32
  }
}

</mosaic_0001>

<llo_original>
// kernel: tpu_custom_call.1
$region0: #{tpu_custom_call.1}
  #allocation0 [shape = 'u32[]', space=smem, size = 0x4, offset = 0x4, fixed_abs, tag = 'smem constant byte address 0x4 - core index']
  #allocation1 [shape = 'u32[144,128]{1,0:T(1,128)}', space=vmem, size = 0x12000, scoped, tag = 'internal scratch']
  #allocation2 [shape = 'f32[8,32]{1,0:T(8,128)}', space=vmem, size = 0x1000, scoped, tag = 'scratch operand']
  #allocation3 [shape = 'f32[8,32]{1,0:T(8,128)}', space=vmem, size = 0x1000, scoped, tag = 'scratch operand']
  #allocation4 [shape = 'f32[8,32]{1,0:T(8,128)}', space=vmem, size = 0x1000, scoped, tag = 'scratch operand']
  #allocation5 [shape = 'f32[8,32]{1,0:T(8,128)}', space=vmem, size = 0x1000, scoped, tag = 'scratch operand']
  %s0 = inlined_call_operand.hbm [shape: f32[12,8,128], index: 0, kind: input, shape index: {}]
  %s1 = inlined_call_operand.hbm [shape: f32[12,8,128], index: 1, kind: input, shape index: {}]
  %s2 = inlined_call_operand.hbm [shape: f32[32,128], index: 2, kind: input, shape index: {}]
  %s3 = inlined_call_operand.hbm [shape: f32[32,128], index: 3, kind: input, shape index: {}]
  %s4 = inlined_call_operand.hbm [shape: f32[12,8,32], index: 4, kind: output, shape index: {0}]
  %s5 = inlined_call_operand.hbm [shape: f32[12,8,32], index: 5, kind: output, shape index: {1}]
  %6 = xla_tuple %s4, %s5
  %s7 = sld [smem:[#allocation0]]
  $region77: #{tpu_custom_call.1} parent=0
    _
  %s9 = ssub.s32 1, %s7
  %s10 = scalar_select 0, %s9, %s7
  $region1: #{tpu_custom_call.1} parent=0
    #allocation6 [shape = 'u8[32768]{0}', space=vmem, size = 0x8000, scoped, tag = 'input window, operand 0']
    #allocation7 [shape = 's32[2]{0}', space=sflag, size = 0x8, scoped, tag = 'scoped memory for tpu_custom_call.1']
    #allocation8 [shape = 's32[2]{0}', space=sflag, size = 0x8, scoped, tag = 'scoped memory for tpu_custom_call.1']
    #allocation9 [shape = 'u8[32768]{0}', space=vmem, size = 0x8000, scoped, tag = 'input window, operand 1']
    #allocation10 [shape = 's32[2]{0}', space=sflag, size = 0x8, scoped, tag = 'scoped memory for tpu_custom_call.1']
    #allocation11 [shape = 'u8[16384]{0}', space=vmem, size = 0x4000, scoped, tag = 'input window, operand 2, single buffered']
    #allocation12 [shape = 'u8[16384]{0}', space=vmem, size = 0x4000, scoped, tag = 'input window, operand 3, single buffered']
    #allocation13 [shape = 's32[1]{0}', space=sflag, size = 0x4, scoped, tag = 'scoped memory for tpu_custom_call.1']
    #allocation14 [shape = 'u8[32768]{0}', space=vmem, size = 0x8000, scoped, tag = 'output window, operand 0']
    #allocation15 [shape = 'u8[32768]{0}', space=vmem, size = 0x8000, scoped, tag = 'output window, operand 1']
    #allocation16 [shape = 's32[2]{0}', space=sflag, size = 0x8, scoped, tag = 'scoped memory for tpu_custom_call.1']
    %11 = vsyncpa [#allocation7], 0
    %s12 = scalar_lea.sflag [#allocation7], 1
    %13 = vsyncpa %s12, 0
    %14 = vsyncpa [#allocation10], 0
    %s15 = scalar_lea.sflag [#allocation10], 1
    %16 = vsyncpa %s15, 0
    %17 = vsyncpa [#allocation13], 0
    %18 = vsyncpa [#allocation8], 0
    %s19 = scalar_lea.sflag [#allocation8], 1
    %20 = vsyncpa %s19, 0
    %21 = vsyncpa [#allocation16], 0
    %s22 = scalar_lea.sflag [#allocation16], 1
    %23 = vsyncpa %s22, 0
    loop: start=0, step=1, limit=5
    $region2: #{tpu_custom_call.1} parent=1 // loop_pre_header
      _
    $region3: #{tpu_custom_call.1} parent=1 // loop_header
      %s25 = sphi 0, %s29
      %p26 = scmp.ge.s32.totalorder %s25, 5
      %s35 = sphi 0, %s37
      %s38 = sphi 0, %s35
      %s39 = sphi 0, %s38
      %s55 = sphi 0, %s39
      %s63 = sphi 0, %s65
      %s66 = sphi 0, %s63
      %s67 = sphi 0, %s66
      %s83 = sphi 0, %s67
      %s87 = sphi 0, %s87
      %s89 = sphi 0, %s87
      %s90 = sphi 0, %s89
      %s104 = sphi 0, %s90
      %s108 = sphi 0, %s108
      %s110 = sphi 0, %s108
      %s111 = sphi 0, %s110
      %s125 = sphi 0, %s111
      %s131 = sphi 0, %s133
      %s134 = sphi 0, %s131
      %s135 = sphi 0, %s134
      %s151 = sphi 0, %s135
      %s159 = sphi 0, %s161
      %s162 = sphi 0, %s159
      %s163 = sphi 0, %s162
      %s179 = sphi 0, %s163
    $region4: #{tpu_custom_call.1} parent=1 // loop_header_branch
      %28 = sbr.rel (%p26) target = $region8
    $region5: #{tpu_custom_call.1} parent=1 // loop_body
      %s30 = ssub.s32 %s25, 1
      %s31 = ssub.s32 %s25, 2
      %s32 = sadd.s32 %s25, 1
      %s33 = ssub.s32 %s25, %s32
      %p34 = scmp.eq.s32.totalorder %s33, 0
      %s36 = sadd.s32 %s35, 1
      %s37 = scalar_select %p34, %s35, %s36
      %p40 = pneg %p34
      %p41 = scmp.eq.s32.totalorder %s25, 2
      %p42 = por %p40, %p41
      %p43 = scmp.ne.s32.totalorder %s35, %s38
      %p44 = scmp.eq.s32.totalorder %s25, 0
      %p45 = por %p43, %p44
      %p46 = scmp.ne.s32.totalorder %s35, %s38
      %p47 = scmp.eq.s32.totalorder %s30, 2
      %p48 = por %p46, %p47
      %p49 = scmp.ne.s32.totalorder %s38, %s39
      %p50 = scmp.eq.s32.totalorder %s30, 0
      %p51 = por %p49, %p50
      %p52 = scmp.ne.s32.totalorder %s38, %s39
      %p53 = scmp.eq.s32.totalorder %s31, 2
      %p54 = por %p52, %p53
      %p56 = scmp.ne.s32.totalorder %s39, %s55
      %p57 = scmp.eq.s32.totalorder %s31, 0
      %p58 = por %p56, %p57
      %s59 = ssub.s32 2, %s25
      %s60 = ssub.s32 2, %s32
      %s61 = ssub.s32 %s59, %s60
      %p62 = scmp.eq.s32.totalorder %s61, 0
      %s64 = sadd.s32 %s63, 1
      %s65 = scalar_select %p62, %s63, %s64
      %p68 = pneg %p62
      %p69 = scmp.eq.s32.totalorder %s25, 2
      %p70 = por %p68, %p69
      %p71 = scmp.ne.s32.totalorder %s63, %s66
      %p72 = scmp.eq.s32.totalorder %s25, 0
      %p73 = por %p71, %p72
      %p74 = scmp.ne.s32.totalorder %s63, %s66
      %p75 = scmp.eq.s32.totalorder %s30, 2
      %p76 = por %p74, %p75
      %p77 = scmp.ne.s32.totalorder %s66, %s67
      %p78 = scmp.eq.s32.totalorder %s30, 0
      %p79 = por %p77, %p78
      %p80 = scmp.ne.s32.totalorder %s66, %s67
      %p81 = scmp.eq.s32.totalorder %s31, 2
      %p82 = por %p80, %p81
      %p84 = scmp.ne.s32.totalorder %s67, %s83
      %p85 = scmp.eq.s32.totalorder %s31, 0
      %p86 = por %p84, %p85
      %s88 = sadd.s32 %s87, 1
      %p91 = scmp.eq.s32.totalorder %s25, 2
      %p92 = scmp.ne.s32.totalorder %s87, %s89
      %p93 = scmp.eq.s32.totalorder %s25, 0
      %p94 = por %p92, %p93
      %p95 = scmp.ne.s32.totalorder %s87, %s89
      %p96 = scmp.eq.s32.totalorder %s30, 2
      %p97 = por %p95, %p96
      %p98 = scmp.ne.s32.totalorder %s89, %s90
      %p99 = scmp.eq.s32.totalorder %s30, 0
      %p100 = por %p98, %p99
      %p101 = scmp.ne.s32.totalorder %s89, %s90
      %p102 = scmp.eq.s32.totalorder %s31, 2
      %p103 = por %p101, %p102
      %p105 = scmp.ne.s32.totalorder %s90, %s104
      %p106 = scmp.eq.s32.totalorder %s31, 0
      %p107 = por %p105, %p106
      %s109 = sadd.s32 %s108, 1
      %p112 = scmp.eq.s32.totalorder %s25, 2
      %p113 = scmp.ne.s32.totalorder %s108, %s110
      %p114 = scmp.eq.s32.totalorder %s25, 0
      %p115 = por %p113, %p114
      %p116 = scmp.ne.s32.totalorder %s108, %s110
      %p117 = scmp.eq.s32.totalorder %s30, 2
      %p118 = por %p116, %p117
      %p119 = scmp.ne.s32.totalorder %s110, %s111
      %p120 = scmp.eq.s32.totalorder %s30, 0
      %p121 = por %p119, %p120
      %p122 = scmp.ne.s32.totalorder %s110, %s111
      %p123 = scmp.eq.s32.totalorder %s31, 2
      %p124 = por %p122, %p123
      %p126 = scmp.ne.s32.totalorder %s111, %s125
      %p127 = scmp.eq.s32.totalorder %s31, 0
      %p128 = por %p126, %p127
      %s129 = ssub.s32 %s25, %s32
      %p130 = scmp.eq.s32.totalorder %s129, 0
      %s132 = sadd.s32 %s131, 1
      %s133 = scalar_select %p130, %s131, %s132
      %p136 = pneg %p130
      %p137 = scmp.eq.s32.totalorder %s25, 2
      %p138 = por %p136, %p137
      %p139 = scmp.ne.s32.totalorder %s131, %s134
      %p140 = scmp.eq.s32.totalorder %s25, 0
      %p141 = por %p139, %p140
      %p142 = scmp.ne.s32.totalorder %s131, %s134
      %p143 = scmp.eq.s32.totalorder %s30, 2
      %p144 = por %p142, %p143
      %p145 = scmp.ne.s32.totalorder %s134, %s135
      %p146 = scmp.eq.s32.totalorder %s30, 0
      %p147 = por %p145, %p146
      %p148 = scmp.ne.s32.totalorder %s134, %s135
      %p149 = scmp.eq.s32.totalorder %s31, 2
      %p150 = por %p148, %p149
      %p152 = scmp.ne.s32.totalorder %s135, %s151
      %p153 = scmp.eq.s32.totalorder %s31, 0
      %p154 = por %p152, %p153
      %s155 = ssub.s32 2, %s25
      %s156 = ssub.s32 2, %s32
      %s157 = ssub.s32 %s155, %s156
      %p158 = scmp.eq.s32.totalorder %s157, 0
      %s160 = sadd.s32 %s159, 1
      %s161 = scalar_select %p158, %s159, %s160
      %p164 = pneg %p158
      %p165 = scmp.eq.s32.totalorder %s25, 2
      %p166 = por %p164, %p165
      %p167 = scmp.ne.s32.totalorder %s159, %s162
      %p168 = scmp.eq.s32.totalorder %s25, 0
      %p169 = por %p167, %p168
      %p170 = scmp.ne.s32.totalorder %s159, %s162
      %p171 = scmp.eq.s32.totalorder %s30, 2
      %p172 = por %p170, %p171
      %p173 = scmp.ne.s32.totalorder %s162, %s163
      %p174 = scmp.eq.s32.totalorder %s30, 0
      %p175 = por %p173, %p174
      %p176 = scmp.ne.s32.totalorder %s162, %s163
      %p177 = scmp.eq.s32.totalorder %s31, 2
      %p178 = por %p176, %p177
      %p180 = scmp.ne.s32.totalorder %s163, %s179
      %p181 = scmp.eq.s32.totalorder %s31, 0
      %p182 = por %p180, %p181
      %p183 = scmp.le.s32.totalorder 1, %s25
      %p184 = scmp.lt.s32.totalorder %s25, 4
      %p185 = pnand %p183, %p184
      %p186 = pneg %p185
      // Predicated region
      $region9: #{tpu_custom_call.1} parent=5 // pred_check
        _
      $region10: #{tpu_custom_call.1} parent=5 // pred_check_branch
        %188 = sbr.rel (%p185) target = $region12
      $region11: #{tpu_custom_call.1} parent=5 // pred_region
        %s189 = ssub.s32 %s25, 1
        // Predicated region
        $region13: #{tpu_custom_call.1} parent=11 // pred_check
          %p190 = pneg %p100
        $region14: #{tpu_custom_call.1} parent=11 // pred_check_branch
          %192 = sbr.rel (%p190) target = $region16
        $region15: #{tpu_custom_call.1} parent=11 // pred_region
          %s194 = ssub.s32 512, 512
          %195 = vsyncadd [#allocation10], %s194
          %s196 = sshll.u32 [#allocation11], 4
          %s197 = int_to_ptr.vmem [resolvable:$true] %s196
          %202 = dma.hbm_to_vmem [thread:$0]  %s2, 512, %s197, [#allocation10], 128, 128, 8
        $region16: #{tpu_custom_call.1} parent=11 // pred_fallthru
          _
        // Predicated region
        $region17: #{tpu_custom_call.1} parent=11 // pred_check
          %p203 = pneg %p121
        $region18: #{tpu_custom_call.1} parent=11 // pred_check_branch
          %205 = sbr.rel (%p203) target = $region20
        $region19: #{tpu_custom_call.1} parent=11 // pred_region
          %s207 = ssub.s32 512, 512
          %208 = vsyncadd [#allocation13], %s207
          %s209 = sshll.u32 [#allocation12], 4
          %s210 = int_to_ptr.vmem [resolvable:$true] %s209
          %215 = dma.hbm_to_vmem [thread:$0]  %s3, 512, %s210, [#allocation13], 128, 128, 8
        $region20: #{tpu_custom_call.1} parent=11 // pred_fallthru
          _
      $region12: #{tpu_custom_call.1} parent=5 // pred_fallthru
        _
      %p216 = scmp.lt.s32.totalorder %s25, 3
      // Predicated region
      $region21: #{tpu_custom_call.1} parent=5 // pred_check
        %p217 = pneg %p216
      $region22: #{tpu_custom_call.1} parent=5 // pred_check_branch
        %219 = sbr.rel (%p217) target = $region24
      $region23: #{tpu_custom_call.1} parent=5 // pred_region
        // Predicated region
        $region25: #{tpu_custom_call.1} parent=23 // pred_check
          %p220 = pneg %p45
        $region26: #{tpu_custom_call.1} parent=23 // pred_check_branch
          %222 = sbr.rel (%p220) target = $region28
        $region27: #{tpu_custom_call.1} parent=23 // pred_region
          %s223 = sand.u32 %s35, 1
          %s224 = scalar_lea.sflag [#allocation7], %s223
          %s225 = sand.u32 %s35, 1
          %s226 = smul.addr %s225, 32
          %s227 = scalar_lea.vmem [#allocation6], %s226
          %s228 = smul.u32 4, %s25
          %s230 = ssub.s32 512, 512
          %231 = vsyncadd %s224, %s230
          %s232 = smul.addr %s228, 128
          %s233 = scalar_lea.hbm %s0, %s232
          %s234 = sshll.u32 %s227, 4
          %s235 = int_to_ptr.vmem [resolvable:$true] %s234
          %240 = dma.hbm_to_vmem [thread:$0]  %s233, 512, %s235, %s224, 128, 128, 8
        $region28: #{tpu_custom_call.1} parent=23 // pred_fallthru
          _
        // Predicated region
        $region29: #{tpu_custom_call.1} parent=23 // pred_check
          %p241 = pneg %p73
        $region30: #{tpu_custom_call.1} parent=23 // pred_check_branch
          %243 = sbr.rel (%p241) target = $region32
        $region31: #{tpu_custom_call.1} parent=23 // pred_region
          %s244 = sand.u32 %s25, 1
          %s245 = scalar_lea.sflag [#allocation10], %s244
          %s246 = sand.u32 %s63, 1
          %s247 = smul.addr %s246, 32
          %s248 = scalar_lea.vmem [#allocation9], %s247
          %s249 = ssub.s32 2, %s25
          %s250 = smul.u32 4, %s249
          %s252 = ssub.s32 512, 512
          %253 = vsyncadd %s245, %s252
          %s254 = smul.addr %s250, 128
          %s255 = scalar_lea.hbm %s1, %s254
          %s256 = sshll.u32 %s248, 4
          %s257 = int_to_ptr.vmem [resolvable:$true] %s256
          %262 = dma.hbm_to_vmem [thread:$0]  %s255, 512, %s257, %s245, 128, 128, 8
        $region32: #{tpu_custom_call.1} parent=23 // pred_fallthru
          _
      $region24: #{tpu_custom_call.1} parent=5 // pred_fallthru
        _
      %p263 = scmp.le.s32.totalorder 1, %s25
      %p264 = scmp.lt.s32.totalorder %s25, 4
      %p265 = pnand %p263, %p264
      %p266 = pneg %p265
      // Predicated region
      $region33: #{tpu_custom_call.1} parent=5 // pred_check
        _
      $region34: #{tpu_custom_call.1} parent=5 // pred_check_branch
        %268 = sbr.rel (%p265) target = $region36
      $region35: #{tpu_custom_call.1} parent=5 // pred_region
        %s269 = ssub.s32 %s25, 1
        %s270 = sand.u32 %s38, 1
        %s271 = scalar_lea.sflag [#allocation7], %s270
        %s272 = sand.u32 %s38, 1
        %s273 = smul.addr %s272, 32
        %s274 = scalar_lea.vmem [#allocation6], %s273
        // Predicated region
        $region37: #{tpu_custom_call.1} parent=35 // pred_check
          %p275 = pneg %p51
        $region38: #{tpu_custom_call.1} parent=35 // pred_check_branch
          %277 = sbr.rel (%p275) target = $region40
        $region39: #{tpu_custom_call.1} parent=35 // pred_region
          %278 = dma.done %s271, 512
        $region40: #{tpu_custom_call.1} parent=35 // pred_fallthru
          _
        %s279 = sand.u32 %s30, 1
        %s280 = scalar_lea.sflag [#allocation10], %s279
        %s281 = sand.u32 %s66, 1
        %s282 = smul.addr %s281, 32
        %s283 = scalar_lea.vmem [#allocation9], %s282
        // Predicated region
        $region41: #{tpu_custom_call.1} parent=35 // pred_check
          %p284 = pneg %p79
        $region42: #{tpu_custom_call.1} parent=35 // pred_check_branch
          %286 = sbr.rel (%p284) target = $region44
        $region43: #{tpu_custom_call.1} parent=35 // pred_region
          %287 = dma.done %s280, 512
        $region44: #{tpu_custom_call.1} parent=35 // pred_fallthru
          _
        // Predicated region
        $region45: #{tpu_custom_call.1} parent=35 // pred_check
          %p288 = pneg %p100
        $region46: #{tpu_custom_call.1} parent=35 // pred_check_branch
          %290 = sbr.rel (%p288) target = $region48
        $region47: #{tpu_custom_call.1} parent=35 // pred_region
          %291 = dma.done [#allocation10], 512
        $region48: #{tpu_custom_call.1} parent=35 // pred_fallthru
          _
        // Predicated region
        $region49: #{tpu_custom_call.1} parent=35 // pred_check
          %p292 = pneg %p121
        $region50: #{tpu_custom_call.1} parent=35 // pred_check_branch
          %294 = sbr.rel (%p292) target = $region52
        $region51: #{tpu_custom_call.1} parent=35 // pred_region
          %295 = dma.done [#allocation13], 512
        $region52: #{tpu_custom_call.1} parent=35 // pred_fallthru
          _
        %s296 = sand.u32 %s38, 1
        %s297 = scalar_lea.sflag [#allocation7], %s296
        %s298 = sand.u32 %s38, 1
        %s299 = smul.addr %s298, 32
        %s300 = scalar_lea.vmem [#allocation6], %s299
        %p301 = pneg %p51
        %p302 = pneg %p48
        %s303 = sand.u32 %s30, 1
        %s304 = scalar_lea.sflag [#allocation10], %s303
        %s305 = sand.u32 %s66, 1
        %s306 = smul.addr %s305, 32
        %s307 = scalar_lea.vmem [#allocation9], %s306
        %p308 = pneg %p79
        %p309 = pneg %p76
        %p310 = pneg %p100
        %p311 = pneg %p97
        %p312 = pneg %p121
        %p313 = pneg %p118
        %p314 = pneg %p147
        %p315 = pneg %p144
        %s316 = sand.u32 %s134, 1
        %s317 = scalar_lea.sflag [#allocation8], %s316
        %s318 = sand.u32 %s134, 1
        %s319 = smul.addr %s318, 32
        %s320 = scalar_lea.vmem [#allocation14], %s319
        %p321 = pneg %p175
        %p322 = pneg %p172
        %s323 = sand.u32 %s162, 1
        %s324 = scalar_lea.sflag [#allocation16], %s323
        %s325 = sand.u32 %s162, 1
        %s326 = smul.addr %s325, 32
        %s327 = scalar_lea.vmem [#allocation15], %s326
        %s328 = smul.u32 4, %s30
        %s329 = ssub.s32 2, %s30
        %s330 = smul.u32 4, %s329
        %s331 = smul.u32 4, %s30
        %s332 = ssub.s32 2, %s30
        %s333 = smul.u32 4, %s332
        %p334 = scmp.eq.s32.totalorder %s30, 0
        // Predicated region
        $region53: #{tpu_custom_call.1} parent=35 // pred_check
          %p335 = pneg %p334
        $region54: #{tpu_custom_call.1} parent=35 // pred_check_branch
          %337 = sbr.rel (%p335) target = $region56
        $region55: #{tpu_custom_call.1} parent=35 // pred_region
          %vm338 = vcmask 261120
          %339 = vst.msk [vmem:[#allocation2] sm:$0xff] %vm338, 0.0
          %340 = vst.msk [vmem:[#allocation3] sm:$0xff] %vm338, 0.0
          %341 = vst.msk [vmem:[#allocation4] sm:$0xff] %vm338, 0.0
          %342 = vst.msk [vmem:[#allocation5] sm:$0xff] %vm338, 0.0
        $region56: #{tpu_custom_call.1} parent=35 // pred_fallthru
          _
        %v343 = vld [vmem:[#allocation2] sm:$0xff]
        %v344 = vld [vmem:[#allocation3] sm:$0xff]
        %v345 = vld [vmem:[#allocation4] sm:$0xff]
        %v346 = vld [vmem:[#allocation5] sm:$0xff]
        %v347 = vld [vmem:[%s274] sm:$0xff]
        %v348 = vld [vmem:[#allocation11] sm:$0xff]
        %v349 = vld [vmem:[#allocation11 + $0x8] sm:$0xff]
        %v350 = vld [vmem:[#allocation11 + $0x10] sm:$0xff]
        %v351 = vld [vmem:[#allocation11 + $0x18] sm:$0xff]
        %vm352 = vcmask 261120
        %v354 = vsel %vm352, %v343, 0
        %356 = vmatprep.subr.mxu0 0.0
        %357 = vmatpush1.msra.mxu0 %v348
        %358 = vmatprep.subr.mxu0 0.0
        %359 = vmatpush1.msra.mxu0 %v349
        %360 = vmatprep.subr.mxu0 0.0
        %361 = vmatpush1.msra.mxu0 %v350
        %362 = vmatprep.subr.mxu0 0.0
        %363 = vmatpush1.msra.mxu0 %v351
        %364 = vmatprep.subr.mxu0 0.0
        %365 = vmatpush1.msra.mxu0 0.0
        %366 = vmatprep.subr.mxu0 0.0
        %367 = vmatpush1.msra.mxu0 0.0
        %368 = vmatprep.subr.mxu0 0.0
        %369 = vmatpush1.msra.mxu0 0.0
        %370 = vmatprep.subr.mxu0 0.0
        %371 = vmatpush1.msra.mxu0 0.0
        %372 = vmatprep.subr.mxu0 0.0
        %373 = vmatpush1.msra.mxu0 0.0
        %374 = vmatprep.subr.mxu0 0.0
        %375 = vmatpush1.msra.mxu0 0.0
        %376 = vmatprep.subr.mxu0 0.0
        %377 = vmatpush1.msra.mxu0 0.0
        %378 = vmatprep.subr.mxu0 0.0
        %379 = vmatpush1.msra.mxu0 0.0
        %380 = vmatprep.subr.mxu0 0.0
        %381 = vmatpush1.msra.mxu0 0.0
        %382 = vmatprep.subr.mxu0 0.0
        %383 = vmatpush1.msra.mxu0 0.0
        %384 = vmatprep.subr.mxu0 0.0
        %385 = vmatpush1.msra.mxu0 0.0
        %386 = vmatprep.subr.mxu0 0.0
        %387 = vmatpush1.msra.mxu0 0.0
        %388 = vmatprep.subr.mxu0 0.0
        %389 = vmatpush1.msra.mxu0 0.0
        %390 = vmatprep.subr.mxu0 0.0
        %391 = vmatpush1.msra.mxu0 0.0
        %392 = vmatprep.subr.mxu0 0.0
        %393 = vmatpush1.msra.mxu0 0.0
        %394 = vmatprep.subr.mxu0 0.0
        %395 = vmatpush1.msra.mxu0 0.0
        %396 = vmatprep.subr.mxu0 0.0
        %397 = vmatpush1.msra.mxu0 0.0
        %398 = vmatprep.subr.mxu0 0.0
        %399 = vmatpush1.msra.mxu0 0.0
        %400 = vmatprep.subr.mxu0 0.0
        %401 = vmatpush1.msra.mxu0 0.0
        %402 = vmatprep.subr.mxu0 0.0
        %403 = vmatpush1.msra.mxu0 0.0
        %404 = vmatprep.subr.mxu0 0.0
        %405 = vmatpush1.msra.mxu0 0.0
        %406 = vmatprep.subr.mxu0 0.0
        %407 = vmatpush1.msra.mxu0 0.0
        %408 = vmatprep.subr.mxu0 0.0
        %409 = vmatpush1.msra.mxu0 0.0
        %410 = vmatprep.subr.mxu0 0.0
        %411 = vmatpush1.msra.mxu0 0.0
        %412 = vmatprep.subr.mxu0 0.0
        %413 = vmatpush1.msra.mxu0 0.0
        %414 = vmatprep.subr.mxu0 0.0
        %415 = vmatpush1.msra.mxu0 0.0
        %416 = vmatprep.subr.mxu0 0.0
        %417 = vmatpush1.msra.mxu0 0.0
        %418 = vmatprep.subr.mxu0 0.0
        %419 = vmatpush1.msra.mxu0 0.0
        %420 = vmatprep.mubr.f32.mxu0 0.0
        %421 = vmatmul.mubr.f32.gmra.mrb[0].mxu0 %v354
        %v422 = vpop.f32.mrb[0].mxu0
        %v423 = vadd.f32 0.0, %v422
        %v424 = vpop.f32.mrb[0].mxu0
        %425 = vdwg.mxu0
        %v426 = vadd.f32 %v347, %v423
        %s427 = scalar_lea.vmem %s283, 24 [#allocation9]
        %v428 = vld [vmem:[%s427] sm:$0xff]
        %v429 = vld [vmem:[#allocation12] sm:$0xff]
        %v430 = vld [vmem:[#allocation12 + $0x8] sm:$0xff]
        %v431 = vld [vmem:[#allocation12 + $0x10] sm:$0xff]
        %v432 = vld [vmem:[#allocation12 + $0x18] sm:$0xff]
        %v434 = vsel %vm352, %v345, 0
        %436 = vmatprep.subr.mxu0 0.0
        %437 = vmatpush1.msra.mxu0 %v429
        %438 = vmatprep.subr.mxu0 0.0
        %439 = vmatpush1.msra.mxu0 %v430
        %440 = vmatprep.subr.mxu0 0.0
        %441 = vmatpush1.msra.mxu0 %v431
        %442 = vmatprep.subr.mxu0 0.0
        %443 = vmatpush1.msra.mxu0 %v432
        %444 = vmatprep.subr.mxu0 0.0
        %445 = vmatpush1.msra.mxu0 0.0
        %446 = vmatprep.subr.mxu0 0.0
        %447 = vmatpush1.msra.mxu0 0.0
        %448 = vmatprep.subr.mxu0 0.0
        %449 = vmatpush1.msra.mxu0 0.0
        %450 = vmatprep.subr.mxu0 0.0
        %451 = vmatpush1.msra.mxu0 0.0
        %452 = vmatprep.subr.mxu0 0.0
        %453 = vmatpush1.msra.mxu0 0.0
        %454 = vmatprep.subr.mxu0 0.0
        %455 = vmatpush1.msra.mxu0 0.0
        %456 = vmatprep.subr.mxu0 0.0
        %457 = vmatpush1.msra.mxu0 0.0
        %458 = vmatprep.subr.mxu0 0.0
        %459 = vmatpush1.msra.mxu0 0.0
        %460 = vmatprep.subr.mxu0 0.0
        %461 = vmatpush1.msra.mxu0 0.0
        %462 = vmatprep.subr.mxu0 0.0
        %463 = vmatpush1.msra.mxu0 0.0
        %464 = vmatprep.subr.mxu0 0.0
        %465 = vmatpush1.msra.mxu0 0.0
        %466 = vmatprep.subr.mxu0 0.0
        %467 = vmatpush1.msra.mxu0 0.0
        %468 = vmatprep.subr.mxu0 0.0
        %469 = vmatpush1.msra.mxu0 0.0
        %470 = vmatprep.subr.mxu0 0.0
        %471 = vmatpush1.msra.mxu0 0.0
        %472 = vmatprep.subr.mxu0 0.0
        %473 = vmatpush1.msra.mxu0 0.0
        %474 = vmatprep.subr.mxu0 0.0
        %475 = vmatpush1.msra.mxu0 0.0
        %476 = vmatprep.subr.mxu0 0.0
        %477 = vmatpush1.msra.mxu0 0.0
        %478 = vmatprep.subr.mxu0 0.0
        %479 = vmatpush1.msra.mxu0 0.0
        %480 = vmatprep.subr.mxu0 0.0
        %481 = vmatpush1.msra.mxu0 0.0
        %482 = vmatprep.subr.mxu0 0.0
        %483 = vmatpush1.msra.mxu0 0.0
        %484 = vmatprep.subr.mxu0 0.0
        %485 = vmatpush1.msra.mxu0 0.0
        %486 = vmatprep.subr.mxu0 0.0
        %487 = vmatpush1.msra.mxu0 0.0
        %488 = vmatprep.subr.mxu0 0.0
        %489 = vmatpush1.msra.mxu0 0.0
        %490 = vmatprep.subr.mxu0 0.0
        %491 = vmatpush1.msra.mxu0 0.0
        %492 = vmatprep.subr.mxu0 0.0
        %493 = vmatpush1.msra.mxu0 0.0
        %494 = vmatprep.subr.mxu0 0.0
        %495 = vmatpush1.msra.mxu0 0.0
        %496 = vmatprep.subr.mxu0 0.0
        %497 = vmatpush1.msra.mxu0 0.0
        %498 = vmatprep.subr.mxu0 0.0
        %499 = vmatpush1.msra.mxu0 0.0
        %500 = vmatprep.mubr.f32.mxu0 0.0
        %501 = vmatmul.mubr.f32.gmra.mrb[0].mxu0 %v434
        %v502 = vpop.f32.mrb[0].mxu0
        %v503 = vadd.f32 0.0, %v502
        %v504 = vpop.f32.mrb[0].mxu0
        %505 = vdwg.mxu0
        %v506 = vadd.f32 %v428, %v503
        %v507 = vxor.u32 %v426, 2147483648
        %v508 = vmul.f32 %v507, 1.442695
        %v509 = vpow.pop %v508
        %v510 = vadd.f32 %v509, 1.0
        %v511 = vrcp.pop %v510
        %v512 = vmul.f32 1.0, %v511
        %v513 = vtanh.pop %v426
        %515 = vrot.lane.b32.xlu0 %v344, 32
        %v516 = vpop.permute.xlu0 %515
        %v518 = vmul.f32 %v512, %v516
        %520 = vrot.lane.b32.xlu0 %v513, 64
        %v521 = vpop.permute.xlu0 %520
        %v523 = vmul.f32 %v512, %v521
        %525 = vrot.lane.b32.xlu0 %v523, 32
        %v526 = vpop.permute.xlu0 %525
        %v528 = vadd.f32 %v518, %v526
        %v529 = vtanh.pop %v528
        %531 = vrot.lane.b32.xlu0 %v529, 64
        %v532 = vpop.permute.xlu0 %531
        %v534 = vmul.f32 %v512, %v532
        %v535 = vxor.u32 %v506, 2147483648
        %v536 = vmul.f32 %v535, 1.442695
        %v537 = vpow.pop %v536
        %v538 = vadd.f32 %v537, 1.0
        %v539 = vrcp.pop %v538
        %v540 = vmul.f32 1.0, %v539
        %v541 = vtanh.pop %v506
        %543 = vrot.lane.b32.xlu0 %v346, 32
        %v544 = vpop.permute.xlu0 %543
        %v546 = vmul.f32 %v540, %v544
        %548 = vrot.lane.b32.xlu0 %v541, 64
        %v549 = vpop.permute.xlu0 %548
        %v551 = vmul.f32 %v540, %v549
        %553 = vrot.lane.b32.xlu0 %v551, 32
        %v554 = vpop.permute.xlu0 %553
        %v556 = vadd.f32 %v546, %v554
        %v557 = vtanh.pop %v556
        %559 = vrot.lane.b32.xlu0 %v557, 64
        %v560 = vpop.permute.xlu0 %559
        %v562 = vmul.f32 %v540, %v560
        %564 = vrot.lane.b32.xlu0 %v534, 32
        %v565 = vpop.permute.xlu0 %564
        %567 = vst.msk [vmem:[%s320] sm:$0xff] %vm352, %v565
        %569 = vrot.lane.b32.xlu0 %v562, 32
        %v570 = vpop.permute.xlu0 %569
        %s572 = scalar_lea.vmem %s327, 24 [#allocation15]
        %573 = vst.msk [vmem:[%s572] sm:$0xff] %vm352, %v570
        %s574 = scalar_lea.vmem %s274, 8 [#allocation6]
        %v575 = vld [vmem:[%s574] sm:$0xff]
        %v576 = vld [vmem:[#allocation11] sm:$0xff]
        %v577 = vld [vmem:[#allocation11 + $0x8] sm:$0xff]
        %v578 = vld [vmem:[#allocation11 + $0x10] sm:$0xff]
        %v579 = vld [vmem:[#allocation11 + $0x18] sm:$0xff]
        %v580 = vsel %vm352, %v565, 0
        %582 = vmatprep.subr.mxu0 0.0
        %583 = vmatpush1.msra.mxu0 %v576
        %584 = vmatprep.subr.mxu0 0.0
        %585 = vmatpush1.msra.mxu0 %v577
        %586 = vmatprep.subr.mxu0 0.0
        %587 = vmatpush1.msra.mxu0 %v578
        %588 = vmatprep.subr.mxu0 0.0
        %589 = vmatpush1.msra.mxu0 %v579
        %590 = vmatprep.subr.mxu0 0.0
        %591 = vmatpush1.msra.mxu0 0.0
        %592 = vmatprep.subr.mxu0 0.0
        %593 = vmatpush1.msra.mxu0 0.0
        %594 = vmatprep.subr.mxu0 0.0
        %595 = vmatpush1.msra.mxu0 0.0
        %596 = vmatprep.subr.mxu0 0.0
        %597 = vmatpush1.msra.mxu0 0.0
        %598 = vmatprep.subr.mxu0 0.0
        %599 = vmatpush1.msra.mxu0 0.0
        %600 = vmatprep.subr.mxu0 0.0
        %601 = vmatpush1.msra.mxu0 0.0
        %602 = vmatprep.subr.mxu0 0.0
        %603 = vmatpush1.msra.mxu0 0.0
        %604 = vmatprep.subr.mxu0 0.0
        %605 = vmatpush1.msra.mxu0 0.0
        %606 = vmatprep.subr.mxu0 0.0
        %607 = vmatpush1.msra.mxu0 0.0
        %608 = vmatprep.subr.mxu0 0.0
        %609 = vmatpush1.msra.mxu0 0.0
        %610 = vmatprep.subr.mxu0 0.0
        %611 = vmatpush1.msra.mxu0 0.0
        %612 = vmatprep.subr.mxu0 0.0
        %613 = vmatpush1.msra.mxu0 0.0
        %614 = vmatprep.subr.mxu0 0.0
        %615 = vmatpush1.msra.mxu0 0.0
        %616 = vmatprep.subr.mxu0 0.0
        %617 = vmatpush1.msra.mxu0 0.0
        %618 = vmatprep.subr.mxu0 0.0
        %619 = vmatpush1.msra.mxu0 0.0
        %620 = vmatprep.subr.mxu0 0.0
        %621 = vmatpush1.msra.mxu0 0.0
        %622 = vmatprep.subr.mxu0 0.0
        %623 = vmatpush1.msra.mxu0 0.0
        %624 = vmatprep.subr.mxu0 0.0
        %625 = vmatpush1.msra.mxu0 0.0
        %626 = vmatprep.subr.mxu0 0.0
        %627 = vmatpush1.msra.mxu0 0.0
        %628 = vmatprep.subr.mxu0 0.0
        %629 = vmatpush1.msra.mxu0 0.0
        %630 = vmatprep.subr.mxu0 0.0
        %631 = vmatpush1.msra.mxu0 0.0
        %632 = vmatprep.subr.mxu0 0.0
        %633 = vmatpush1.msra.mxu0 0.0
        %634 = vmatprep.subr.mxu0 0.0
        %635 = vmatpush1.msra.mxu0 0.0
        %636 = vmatprep.subr.mxu0 0.0
        %637 = vmatpush1.msra.mxu0 0.0
        %638 = vmatprep.subr.mxu0 0.0
        %639 = vmatpush1.msra.mxu0 0.0
        %640 = vmatprep.subr.mxu0 0.0
        %641 = vmatpush1.msra.mxu0 0.0
        %642 = vmatprep.subr.mxu0 0.0
        %643 = vmatpush1.msra.mxu0 0.0
        %644 = vmatprep.subr.mxu0 0.0
        %645 = vmatpush1.msra.mxu0 0.0
        %646 = vmatprep.mubr.f32.mxu0 0.0
        %647 = vmatmul.mubr.f32.gmra.mrb[0].mxu0 %v580
        %v648 = vpop.f32.mrb[0].mxu0
        %v649 = vadd.f32 0.0, %v648
        %v650 = vpop.f32.mrb[0].mxu0
        %651 = vdwg.mxu0
        %v652 = vadd.f32 %v575, %v649
        %s653 = scalar_lea.vmem %s283, 16 [#allocation9]
        %v654 = vld [vmem:[%s653] sm:$0xff]
        %v655 = vld [vmem:[#allocation12] sm:$0xff]
        %v656 = vld [vmem:[#allocation12 + $0x8] sm:$0xff]
        %v657 = vld [vmem:[#allocation12 + $0x10] sm:$0xff]
        %v658 = vld [vmem:[#allocation12 + $0x18] sm:$0xff]
        %v659 = vsel %vm352, %v570, 0
        %661 = vmatprep.subr.mxu0 0.0
        %662 = vmatpush1.msra.mxu0 %v655
        %663 = vmatprep.subr.mxu0 0.0
        %664 = vmatpush1.msra.mxu0 %v656
        %665 = vmatprep.subr.mxu0 0.0
        %666 = vmatpush1.msra.mxu0 %v657
        %667 = vmatprep.subr.mxu0 0.0
        %668 = vmatpush1.msra.mxu0 %v658
        %669 = vmatprep.subr.mxu0 0.0
        %670 = vmatpush1.msra.mxu0 0.0
        %671 = vmatprep.subr.mxu0 0.0
        %672 = vmatpush1.msra.mxu0 0.0
        %673 = vmatprep.subr.mxu0 0.0
        %674 = vmatpush1.msra.mxu0 0.0
        %675 = vmatprep.subr.mxu0 0.0
        %676 = vmatpush1.msra.mxu0 0.0
        %677 = vmatprep.subr.mxu0 0.0
        %678 = vmatpush1.msra.mxu0 0.0
        %679 = vmatprep.subr.mxu0 0.0
        %680 = vmatpush1.msra.mxu0 0.0
        %681 = vmatprep.subr.mxu0 0.0
        %682 = vmatpush1.msra.mxu0 0.0
        %683 = vmatprep.subr.mxu0 0.0
        %684 = vmatpush1.msra.mxu0 0.0
        %685 = vmatprep.subr.mxu0 0.0
        %686 = vmatpush1.msra.mxu0 0.0
        %687 = vmatprep.subr.mxu0 0.0
        %688 = vmatpush1.msra.mxu0 0.0
        %689 = vmatprep.subr.mxu0 0.0
        %690 = vmatpush1.msra.mxu0 0.0
        %691 = vmatprep.subr.mxu0 0.0
        %692 = vmatpush1.msra.mxu0 0.0
        %693 = vmatprep.subr.mxu0 0.0
        %694 = vmatpush1.msra.mxu0 0.0
        %695 = vmatprep.subr.mxu0 0.0
        %696 = vmatpush1.msra.mxu0 0.0
        %697 = vmatprep.subr.mxu0 0.0
        %698 = vmatpush1.msra.mxu0 0.0
        %699 = vmatprep.subr.mxu0 0.0
        %700 = vmatpush1.msra.mxu0 0.0
        %701 = vmatprep.subr.mxu0 0.0
        %702 = vmatpush1.msra.mxu0 0.0
        %703 = vmatprep.subr.mxu0 0.0
        %704 = vmatpush1.msra.mxu0 0.0
        %705 = vmatprep.subr.mxu0 0.0
        %706 = vmatpush1.msra.mxu0 0.0
        %707 = vmatprep.subr.mxu0 0.0
        %708 = vmatpush1.msra.mxu0 0.0
        %709 = vmatprep.subr.mxu0 0.0
        %710 = vmatpush1.msra.mxu0 0.0
        %711 = vmatprep.subr.mxu0 0.0
        %712 = vmatpush1.msra.mxu0 0.0
        %713 = vmatprep.subr.mxu0 0.0
        %714 = vmatpush1.msra.mxu0 0.0
        %715 = vmatprep.subr.mxu0 0.0
        %716 = vmatpush1.msra.mxu0 0.0
        %717 = vmatprep.subr.mxu0 0.0
        %718 = vmatpush1.msra.mxu0 0.0
        %719 = vmatprep.subr.mxu0 0.0
        %720 = vmatpush1.msra.mxu0 0.0
        %721 = vmatprep.subr.mxu0 0.0
        %722 = vmatpush1.msra.mxu0 0.0
        %723 = vmatprep.subr.mxu0 0.0
        %724 = vmatpush1.msra.mxu0 0.0
        %725 = vmatprep.mubr.f32.mxu0 0.0
        %726 = vmatmul.mubr.f32.gmra.mrb[0].mxu0 %v659
        %v727 = vpop.f32.mrb[0].mxu0
        %v728 = vadd.f32 0.0, %v727
        %v729 = vpop.f32.mrb[0].mxu0
        %730 = vdwg.mxu0
        %v731 = vadd.f32 %v654, %v728
        %v732 = vxor.u32 %v652, 2147483648
        %v733 = vmul.f32 %v732, 1.442695
        %v734 = vpow.pop %v733
        %v735 = vadd.f32 %v734, 1.0
        %v736 = vrcp.pop %v735
        %v737 = vmul.f32 1.0, %v736
        %v738 = vtanh.pop %v652
        %v739 = vmul.f32 %v737, %v528
        %741 = vrot.lane.b32.xlu0 %v738, 64
        %v742 = vpop.permute.xlu0 %741
        %v744 = vmul.f32 %v737, %v742
        %746 = vrot.lane.b32.xlu0 %v744, 32
        %v747 = vpop.permute.xlu0 %746
        %v749 = vadd.f32 %v739, %v747
        %v750 = vtanh.pop %v749
        %752 = vrot.lane.b32.xlu0 %v750, 64
        %v753 = vpop.permute.xlu0 %752
        %v755 = vmul.f32 %v737, %v753
        %v756 = vxor.u32 %v731, 2147483648
        %v757 = vmul.f32 %v756, 1.442695
        %v758 = vpow.pop %v757
        %v759 = vadd.f32 %v758, 1.0
        %v760 = vrcp.pop %v759
        %v761 = vmul.f32 1.0, %v760
        %v762 = vtanh.pop %v731
        %v763 = vmul.f32 %v761, %v556
        %765 = vrot.lane.b32.xlu0 %v762, 64
        %v766 = vpop.permute.xlu0 %765
        %v768 = vmul.f32 %v761, %v766
        %770 = vrot.lane.b32.xlu0 %v768, 32
        %v771 = vpop.permute.xlu0 %770
        %v773 = vadd.f32 %v763, %v771
        %v774 = vtanh.pop %v773
        %776 = vrot.lane.b32.xlu0 %v774, 64
        %v777 = vpop.permute.xlu0 %776
        %v779 = vmul.f32 %v761, %v777
        %781 = vrot.lane.b32.xlu0 %v755, 32
        %v782 = vpop.permute.xlu0 %781
        %s784 = scalar_lea.vmem %s320, 8 [#allocation14]
        %785 = vst.msk [vmem:[%s784] sm:$0xff] %vm352, %v782
        %787 = vrot.lane.b32.xlu0 %v779, 32
        %v788 = vpop.permute.xlu0 %787
        %s790 = scalar_lea.vmem %s327, 16 [#allocation15]
        %791 = vst.msk [vmem:[%s790] sm:$0xff] %vm352, %v788
        %s792 = scalar_lea.vmem %s274, 16 [#allocation6]
        %v793 = vld [vmem:[%s792] sm:$0xff]
        %v794 = vld [vmem:[#allocation11] sm:$0xff]
        %v795 = vld [vmem:[#allocation11 + $0x8] sm:$0xff]
        %v796 = vld [vmem:[#allocation11 + $0x10] sm:$0xff]
        %v797 = vld [vmem:[#allocation11 + $0x18] sm:$0xff]
        %v798 = vsel %vm352, %v782, 0
        %800 = vmatprep.subr.mxu0 0.0
        %801 = vmatpush1.msra.mxu0 %v794
        %802 = vmatprep.subr.mxu0 0.0
        %803 = vmatpush1.msra.mxu0 %v795
        %804 = vmatprep.subr.mxu0 0.0
        %805 = vmatpush1.msra.mxu0 %v796
        %806 = vmatprep.subr.mxu0 0.0
        %807 = vmatpush1.msra.mxu0 %v797
        %808 = vmatprep.subr.mxu0 0.0
        %809 = vmatpush1.msra.mxu0 0.0
        %810 = vmatprep.subr.mxu0 0.0
        %811 = vmatpush1.msra.mxu0 0.0
        %812 = vmatprep.subr.mxu0 0.0
        %813 = vmatpush1.msra.mxu0 0.0
        %814 = vmatprep.subr.mxu0 0.0
        %815 = vmatpush1.msra.mxu0 0.0
        %816 = vmatprep.subr.mxu0 0.0
        %817 = vmatpush1.msra.mxu0 0.0
        %818 = vmatprep.subr.mxu0 0.0
        %819 = vmatpush1.msra.mxu0 0.0
        %820 = vmatprep.subr.mxu0 0.0
        %821 = vmatpush1.msra.mxu0 0.0
        %822 = vmatprep.subr.mxu0 0.0
        %823 = vmatpush1.msra.mxu0 0.0
        %824 = vmatprep.subr.mxu0 0.0
        %825 = vmatpush1.msra.mxu0 0.0
        %826 = vmatprep.subr.mxu0 0.0
        %827 = vmatpush1.msra.mxu0 0.0
        %828 = vmatprep.subr.mxu0 0.0
        %829 = vmatpush1.msra.mxu0 0.0
        %830 = vmatprep.subr.mxu0 0.0
        %831 = vmatpush1.msra.mxu0 0.0
        %832 = vmatprep.subr.mxu0 0.0
        %833 = vmatpush1.msra.mxu0 0.0
        %834 = vmatprep.subr.mxu0 0.0
        %835 = vmatpush1.msra.mxu0 0.0
        %836 = vmatprep.subr.mxu0 0.0
        %837 = vmatpush1.msra.mxu0 0.0
        %838 = vmatprep.subr.mxu0 0.0
        %839 = vmatpush1.msra.mxu0 0.0
        %840 = vmatprep.subr.mxu0 0.0
        %841 = vmatpush1.msra.mxu0 0.0
        %842 = vmatprep.subr.mxu0 0.0
        %843 = vmatpush1.msra.mxu0 0.0
        %844 = vmatprep.subr.mxu0 0.0
        %845 = vmatpush1.msra.mxu0 0.0
        %846 = vmatprep.subr.mxu0 0.0
        %847 = vmatpush1.msra.mxu0 0.0
        %848 = vmatprep.subr.mxu0 0.0
        %849 = vmatpush1.msra.mxu0 0.0
        %850 = vmatprep.subr.mxu0 0.0
        %851 = vmatpush1.msra.mxu0 0.0
        %852 = vmatprep.subr.mxu0 0.0
        %853 = vmatpush1.msra.mxu0 0.0
        %854 = vmatprep.subr.mxu0 0.0
        %855 = vmatpush1.msra.mxu0 0.0
        %856 = vmatprep.subr.mxu0 0.0
        %857 = vmatpush1.msra.mxu0 0.0
        %858 = vmatprep.subr.mxu0 0.0
        %859 = vmatpush1.msra.mxu0 0.0
        %860 = vmatprep.subr.mxu0 0.0
        %861 = vmatpush1.msra.mxu0 0.0
        %862 = vmatprep.subr.mxu0 0.0
        %863 = vmatpush1.msra.mxu0 0.0
        %864 = vmatprep.mubr.f32.mxu0 0.0
        %865 = vmatmul.mubr.f32.gmra.mrb[0].mxu0 %v798
        %v866 = vpop.f32.mrb[0].mxu0
        %v867 = vadd.f32 0.0, %v866
        %v868 = vpop.f32.mrb[0].mxu0
        %869 = vdwg.mxu0
        %v870 = vadd.f32 %v793, %v867
        %s871 = scalar_lea.vmem %s283, 8 [#allocation9]
        %v872 = vld [vmem:[%s871] sm:$0xff]
        %v873 = vld [vmem:[#allocation12] sm:$0xff]
        %v874 = vld [vmem:[#allocation12 + $0x8] sm:$0xff]
        %v875 = vld [vmem:[#allocation12 + $0x10] sm:$0xff]
        %v876 = vld [vmem:[#allocation12 + $0x18] sm:$0xff]
        %v877 = vsel %vm352, %v788, 0
        %879 = vmatprep.subr.mxu0 0.0
        %880 = vmatpush1.msra.mxu0 %v873
        %881 = vmatprep.subr.mxu0 0.0
        %882 = vmatpush1.msra.mxu0 %v874
        %883 = vmatprep.subr.mxu0 0.0
        %884 = vmatpush1.msra.mxu0 %v875
        %885 = vmatprep.subr.mxu0 0.0
        %886 = vmatpush1.msra.mxu0 %v876
        %887 = vmatprep.subr.mxu0 0.0
        %888 = vmatpush1.msra.mxu0 0.0
        %889 = vmatprep.subr.mxu0 0.0
        %890 = vmatpush1.msra.mxu0 0.0
        %891 = vmatprep.subr.mxu0 0.0
        %892 = vmatpush1.msra.mxu0 0.0
        %893 = vmatprep.subr.mxu0 0.0
        %894 = vmatpush1.msra.mxu0 0.0
        %895 = vmatprep.subr.mxu0 0.0
        %896 = vmatpush1.msra.mxu0 0.0
        %897 = vmatprep.subr.mxu0 0.0
        %898 = vmatpush1.msra.mxu0 0.0
        %899 = vmatprep.subr.mxu0 0.0
        %900 = vmatpush1.msra.mxu0 0.0
        %901 = vmatprep.subr.mxu0 0.0
        %902 = vmatpush1.msra.mxu0 0.0
        %903 = vmatprep.subr.mxu0 0.0
        %904 = vmatpush1.msra.mxu0 0.0
        %905 = vmatprep.subr.mxu0 0.0
        %906 = vmatpush1.msra.mxu0 0.0
        %907 = vmatprep.subr.mxu0 0.0
        %908 = vmatpush1.msra.mxu0 0.0
        %909 = vmatprep.subr.mxu0 0.0
        %910 = vmatpush1.msra.mxu0 0.0
        %911 = vmatprep.subr.mxu0 0.0
        %912 = vmatpush1.msra.mxu0 0.0
        %913 = vmatprep.subr.mxu0 0.0
        %914 = vmatpush1.msra.mxu0 0.0
        %915 = vmatprep.subr.mxu0 0.0
        %916 = vmatpush1.msra.mxu0 0.0
        %917 = vmatprep.subr.mxu0 0.0
        %918 = vmatpush1.msra.mxu0 0.0
        %919 = vmatprep.subr.mxu0 0.0
        %920 = vmatpush1.msra.mxu0 0.0
        %921 = vmatprep.subr.mxu0 0.0
        %922 = vmatpush1.msra.mxu0 0.0
        %923 = vmatprep.subr.mxu0 0.0
        %924 = vmatpush1.msra.mxu0 0.0
        %925 = vmatprep.subr.mxu0 0.0
        %926 = vmatpush1.msra.mxu0 0.0
        %927 = vmatprep.subr.mxu0 0.0
        %928 = vmatpush1.msra.mxu0 0.0
        %929 = vmatprep.subr.mxu0 0.0
        %930 = vmatpush1.msra.mxu0 0.0
        %931 = vmatprep.subr.mxu0 0.0
        %932 = vmatpush1.msra.mxu0 0.0
        %933 = vmatprep.subr.mxu0 0.0
        %934 = vmatpush1.msra.mxu0 0.0
        %935 = vmatprep.subr.mxu0 0.0
        %936 = vmatpush1.msra.mxu0 0.0
        %937 = vmatprep.subr.mxu0 0.0
        %938 = vmatpush1.msra.mxu0 0.0
        %939 = vmatprep.subr.mxu0 0.0
        %940 = vmatpush1.msra.mxu0 0.0
        %941 = vmatprep.subr.mxu0 0.0
        %942 = vmatpush1.msra.mxu0 0.0
        %943 = vmatprep.mubr.f32.mxu0 0.0
        %944 = vmatmul.mubr.f32.gmra.mrb[0].mxu0 %v877
        %v945 = vpop.f32.mrb[0].mxu0
        %v946 = vadd.f32 0.0, %v945
        %v947 = vpop.f32.mrb[0].mxu0
        %948 = vdwg.mxu0
        %v949 = vadd.f32 %v872, %v946
        %v950 = vxor.u32 %v870, 2147483648
        %v951 = vmul.f32 %v950, 1.442695
        %v952 = vpow.pop %v951
        %v953 = vadd.f32 %v952, 1.0
        %v954 = vrcp.pop %v953
        %v955 = vmul.f32 1.0, %v954
        %v956 = vtanh.pop %v870
        %v957 = vmul.f32 %v955, %v749
        %959 = vrot.lane.b32.xlu0 %v956, 64
        %v960 = vpop.permute.xlu0 %959
        %v962 = vmul.f32 %v955, %v960
        %964 = vrot.lane.b32.xlu0 %v962, 32
        %v965 = vpop.permute.xlu0 %964
        %v967 = vadd.f32 %v957, %v965
        %v968 = vtanh.pop %v967
        %970 = vrot.lane.b32.xlu0 %v968, 64
        %v971 = vpop.permute.xlu0 %970
        %v973 = vmul.f32 %v955, %v971
        %v974 = vxor.u32 %v949, 2147483648
        %v975 = vmul.f32 %v974, 1.442695
        %v976 = vpow.pop %v975
        %v977 = vadd.f32 %v976, 1.0
        %v978 = vrcp.pop %v977
        %v979 = vmul.f32 1.0, %v978
        %v980 = vtanh.pop %v949
        %v981 = vmul.f32 %v979, %v773
        %983 = vrot.lane.b32.xlu0 %v980, 64
        %v984 = vpop.permute.xlu0 %983
        %v986 = vmul.f32 %v979, %v984
        %988 = vrot.lane.b32.xlu0 %v986, 32
        %v989 = vpop.permute.xlu0 %988
        %v991 = vadd.f32 %v981, %v989
        %v992 = vtanh.pop %v991
        %994 = vrot.lane.b32.xlu0 %v992, 64
        %v995 = vpop.permute.xlu0 %994
        %v997 = vmul.f32 %v979, %v995
        %999 = vrot.lane.b32.xlu0 %v973, 32
        %v1000 = vpop.permute.xlu0 %999
        %s1002 = scalar_lea.vmem %s320, 16 [#allocation14]
        %1003 = vst.msk [vmem:[%s1002] sm:$0xff] %vm352, %v1000
        %1005 = vrot.lane.b32.xlu0 %v997, 32
        %v1006 = vpop.permute.xlu0 %1005
        %s1008 = scalar_lea.vmem %s327, 8 [#allocation15]
        %1009 = vst.msk [vmem:[%s1008] sm:$0xff] %vm352, %v1006
        %s1010 = scalar_lea.vmem %s274, 24 [#allocation6]
        %v1011 = vld [vmem:[%s1010] sm:$0xff]
        %v1012 = vld [vmem:[#allocation11] sm:$0xff]
        %v1013 = vld [vmem:[#allocation11 + $0x8] sm:$0xff]
        %v1014 = vld [vmem:[#allocation11 + $0x10] sm:$0xff]
        %v1015 = vld [vmem:[#allocation11 + $0x18] sm:$0xff]
        %v1016 = vsel %vm352, %v1000, 0
        %1018 = vmatprep.subr.mxu0 0.0
        %1019 = vmatpush1.msra.mxu0 %v1012
        %1020 = vmatprep.subr.mxu0 0.0
        %1021 = vmatpush1.msra.mxu0 %v1013
        %1022 = vmatprep.subr.mxu0 0.0
        %1023 = vmatpush1.msra.mxu0 %v1014
        %1024 = vmatprep.subr.mxu0 0.0
        %1025 = vmatpush1.msra.mxu0 %v1015
        %1026 = vmatprep.subr.mxu0 0.0
        %1027 = vmatpush1.msra.mxu0 0.0
        %1028 = vmatprep.subr.mxu0 0.0
        %1029 = vmatpush1.msra.mxu0 0.0
        %1030 = vmatprep.subr.mxu0 0.0
        %1031 = vmatpush1.msra.mxu0 0.0
        %1032 = vmatprep.subr.mxu0 0.0
        %1033 = vmatpush1.msra.mxu0 0.0
        %1034 = vmatprep.subr.mxu0 0.0
        %1035 = vmatpush1.msra.mxu0 0.0
        %1036 = vmatprep.subr.mxu0 0.0
        %1037 = vmatpush1.msra.mxu0 0.0
        %1038 = vmatprep.subr.mxu0 0.0
        %1039 = vmatpush1.msra.mxu0 0.0
        %1040 = vmatprep.subr.mxu0 0.0
        %1041 = vmatpush1.msra.mxu0 0.0
        %1042 = vmatprep.subr.mxu0 0.0
        %1043 = vmatpush1.msra.mxu0 0.0
        %1044 = vmatprep.subr.mxu0 0.0
        %1045 = vmatpush1.msra.mxu0 0.0
        %1046 = vmatprep.subr.mxu0 0.0
        %1047 = vmatpush1.msra.mxu0 0.0
        %1048 = vmatprep.subr.mxu0 0.0
        %1049 = vmatpush1.msra.mxu0 0.0
        %1050 = vmatprep.subr.mxu0 0.0
        %1051 = vmatpush1.msra.mxu0 0.0
        %1052 = vmatprep.subr.mxu0 0.0
        %1053 = vmatpush1.msra.mxu0 0.0
        %1054 = vmatprep.subr.mxu0 0.0
        %1055 = vmatpush1.msra.mxu0 0.0
        %1056 = vmatprep.subr.mxu0 0.0
        %1057 = vmatpush1.msra.mxu0 0.0
        %1058 = vmatprep.subr.mxu0 0.0
        %1059 = vmatpush1.msra.mxu0 0.0
        %1060 = vmatprep.subr.mxu0 0.0
        %1061 = vmatpush1.msra.mxu0 0.0
        %1062 = vmatprep.subr.mxu0 0.0
        %1063 = vmatpush1.msra.mxu0 0.0
        %1064 = vmatprep.subr.mxu0 0.0
        %1065 = vmatpush1.msra.mxu0 0.0
        %1066 = vmatprep.subr.mxu0 0.0
        %1067 = vmatpush1.msra.mxu0 0.0
        %1068 = vmatprep.subr.mxu0 0.0
        %1069 = vmatpush1.msra.mxu0 0.0
        %1070 = vmatprep.subr.mxu0 0.0
        %1071 = vmatpush1.msra.mxu0 0.0
        %1072 = vmatprep.subr.mxu0 0.0
        %1073 = vmatpush1.msra.mxu0 0.0
        %1074 = vmatprep.subr.mxu0 0.0
        %1075 = vmatpush1.msra.mxu0 0.0
        %1076 = vmatprep.subr.mxu0 0.0
        %1077 = vmatpush1.msra.mxu0 0.0
        %1078 = vmatprep.subr.mxu0 0.0
        %1079 = vmatpush1.msra.mxu0 0.0
        %1080 = vmatprep.subr.mxu0 0.0
        %1081 = vmatpush1.msra.mxu0 0.0
        %1082 = vmatprep.mubr.f32.mxu0 0.0
        %1083 = vmatmul.mubr.f32.gmra.mrb[0].mxu0 %v1016
        %v1084 = vpop.f32.mrb[0].mxu0
        %v1085 = vadd.f32 0.0, %v1084
        %v1086 = vpop.f32.mrb[0].mxu0
        %1087 = vdwg.mxu0
        %v1088 = vadd.f32 %v1011, %v1085
        %v1089 = vld [vmem:[%s283] sm:$0xff]
        %v1090 = vld [vmem:[#allocation12] sm:$0xff]
        %v1091 = vld [vmem:[#allocation12 + $0x8] sm:$0xff]
        %v1092 = vld [vmem:[#allocation12 + $0x10] sm:$0xff]
        %v1093 = vld [vmem:[#allocation12 + $0x18] sm:$0xff]
        %v1094 = vsel %vm352, %v1006, 0
        %1096 = vmatprep.subr.mxu0 0.0
        %1097 = vmatpush1.msra.mxu0 %v1090
        %1098 = vmatprep.subr.mxu0 0.0
        %1099 = vmatpush1.msra.mxu0 %v1091
        %1100 = vmatprep.subr.mxu0 0.0
        %1101 = vmatpush1.msra.mxu0 %v1092
        %1102 = vmatprep.subr.mxu0 0.0
        %1103 = vmatpush1.msra.mxu0 %v1093
        %1104 = vmatprep.subr.mxu0 0.0
        %1105 = vmatpush1.msra.mxu0 0.0
        %1106 = vmatprep.subr.mxu0 0.0
        %1107 = vmatpush1.msra.mxu0 0.0
        %1108 = vmatprep.subr.mxu0 0.0
        %1109 = vmatpush1.msra.mxu0 0.0
        %1110 = vmatprep.subr.mxu0 0.0
        %1111 = vmatpush1.msra.mxu0 0.0
        %1112 = vmatprep.subr.mxu0 0.0
        %1113 = vmatpush1.msra.mxu0 0.0
        %1114 = vmatprep.subr.mxu0 0.0
        %1115 = vmatpush1.msra.mxu0 0.0
        %1116 = vmatprep.subr.mxu0 0.0
        %1117 = vmatpush1.msra.mxu0 0.0
        %1118 = vmatprep.subr.mxu0 0.0
        %1119 = vmatpush1.msra.mxu0 0.0
        %1120 = vmatprep.subr.mxu0 0.0
        %1121 = vmatpush1.msra.mxu0 0.0
        %1122 = vmatprep.subr.mxu0 0.0
        %1123 = vmatpush1.msra.mxu0 0.0
        %1124 = vmatprep.subr.mxu0 0.0
        %1125 = vmatpush1.msra.mxu0 0.0
        %1126 = vmatprep.subr.mxu0 0.0
        %1127 = vmatpush1.msra.mxu0 0.0
        %1128 = vmatprep.subr.mxu0 0.0
        %1129 = vmatpush1.msra.mxu0 0.0
        %1130 = vmatprep.subr.mxu0 0.0
        %1131 = vmatpush1.msra.mxu0 0.0
        %1132 = vmatprep.subr.mxu0 0.0
        %1133 = vmatpush1.msra.mxu0 0.0
        %1134 = vmatprep.subr.mxu0 0.0
        %1135 = vmatpush1.msra.mxu0 0.0
        %1136 = vmatprep.subr.mxu0 0.0
        %1137 = vmatpush1.msra.mxu0 0.0
        %1138 = vmatprep.subr.mxu0 0.0
        %1139 = vmatpush1.msra.mxu0 0.0
        %1140 = vmatprep.subr.mxu0 0.0
        %1141 = vmatpush1.msra.mxu0 0.0
        %1142 = vmatprep.subr.mxu0 0.0
        %1143 = vmatpush1.msra.mxu0 0.0
        %1144 = vmatprep.subr.mxu0 0.0
        %1145 = vmatpush1.msra.mxu0 0.0
        %1146 = vmatprep.subr.mxu0 0.0
        %1147 = vmatpush1.msra.mxu0 0.0
        %1148 = vmatprep.subr.mxu0 0.0
        %1149 = vmatpush1.msra.mxu0 0.0
        %1150 = vmatprep.subr.mxu0 0.0
        %1151 = vmatpush1.msra.mxu0 0.0
        %1152 = vmatprep.subr.mxu0 0.0
        %1153 = vmatpush1.msra.mxu0 0.0
        %1154 = vmatprep.subr.mxu0 0.0
        %1155 = vmatpush1.msra.mxu0 0.0
        %1156 = vmatprep.subr.mxu0 0.0
        %1157 = vmatpush1.msra.mxu0 0.0
        %1158 = vmatprep.subr.mxu0 0.0
        %1159 = vmatpush1.msra.mxu0 0.0
        %1160 = vmatprep.mubr.f32.mxu0 0.0
        %1161 = vmatmul.mubr.f32.gmra.mrb[0].mxu0 %v1094
        %v1162 = vpop.f32.mrb[0].mxu0
        %v1163 = vadd.f32 0.0, %v1162
        %v1164 = vpop.f32.mrb[0].mxu0
        %1165 = vdwg.mxu0
        %v1166 = vadd.f32 %v1089, %v1163
        %v1167 = vxor.u32 %v1088, 2147483648
        %v1168 = vmul.f32 %v1167, 1.442695
        %v1169 = vpow.pop %v1168
        %v1170 = vadd.f32 %v1169, 1.0
        %v1171 = vrcp.pop %v1170
        %v1172 = vmul.f32 1.0, %v1171
        %v1173 = vtanh.pop %v1088
        %v1174 = vmul.f32 %v1172, %v967
        %1176 = vrot.lane.b32.xlu0 %v1173, 64
        %v1177 = vpop.permute.xlu0 %1176
        %v1179 = vmul.f32 %v1172, %v1177
        %1181 = vrot.lane.b32.xlu0 %v1179, 32
        %v1182 = vpop.permute.xlu0 %1181
        %v1184 = vadd.f32 %v1174, %v1182
        %v1185 = vtanh.pop %v1184
        %1187 = vrot.lane.b32.xlu0 %v1185, 64
        %v1188 = vpop.permute.xlu0 %1187
        %v1190 = vmul.f32 %v1172, %v1188
        %v1191 = vxor.u32 %v1166, 2147483648
        %v1192 = vmul.f32 %v1191, 1.442695
        %v1193 = vpow.pop %v1192
        %v1194 = vadd.f32 %v1193, 1.0
        %v1195 = vrcp.pop %v1194
        %v1196 = vmul.f32 1.0, %v1195
        %v1197 = vtanh.pop %v1166
        %v1198 = vmul.f32 %v1196, %v991
        %1200 = vrot.lane.b32.xlu0 %v1197, 64
        %v1201 = vpop.permute.xlu0 %1200
        %v1203 = vmul.f32 %v1196, %v1201
        %1205 = vrot.lane.b32.xlu0 %v1203, 32
        %v1206 = vpop.permute.xlu0 %1205
        %v1208 = vadd.f32 %v1198, %v1206
        %v1209 = vtanh.pop %v1208
        %1211 = vrot.lane.b32.xlu0 %v1209, 64
        %v1212 = vpop.permute.xlu0 %1211
        %v1214 = vmul.f32 %v1196, %v1212
        %1216 = vrot.lane.b32.xlu0 %v1190, 32
        %v1217 = vpop.permute.xlu0 %1216
        %s1219 = scalar_lea.vmem %s320, 24 [#allocation14]
        %1220 = vst.msk [vmem:[%s1219] sm:$0xff] %vm352, %v1217
        %1222 = vrot.lane.b32.xlu0 %v1214, 32
        %v1223 = vpop.permute.xlu0 %1222
        %1225 = vst.msk [vmem:[%s327] sm:$0xff] %vm352, %v1223
        %1226 = vst.msk [vmem:[#allocation2] sm:$0xff] %vm352, %v1217
        %1228 = vrot.lane.b32.xlu0 %v1184, 96
        %v1229 = vpop.permute.xlu0 %1228
        %1231 = vst.msk [vmem:[#allocation3] sm:$0xff] %vm352, %v1229
        %1232 = vst.msk [vmem:[#allocation4] sm:$0xff] %vm352, %v1223
        %1234 = vrot.lane.b32.xlu0 %v1208, 96
        %v1235 = vpop.permute.xlu0 %1234
        %1237 = vst.msk [vmem:[#allocation5] sm:$0xff] %vm352, %v1235
        %s1238 = sand.u32 %s134, 1
        %s1239 = scalar_lea.sflag [#allocation8], %s1238
        %s1240 = sand.u32 %s134, 1
        %s1241 = smul.addr %s1240, 32
        %s1242 = scalar_lea.vmem [#allocation14], %s1241
        %s1243 = sand.u32 %s162, 1
        %s1244 = scalar_lea.sflag [#allocation16], %s1243
        %s1245 = sand.u32 %s162, 1
        %s1246 = smul.addr %s1245, 32
        %s1247 = scalar_lea.vmem [#allocation15], %s1246
        // Predicated region
        $region57: #{tpu_custom_call.1} parent=35 // pred_check
          %p1248 = pneg %p144
        $region58: #{tpu_custom_call.1} parent=35 // pred_check_branch
          %1250 = sbr.rel (%p1248) target = $region60
        $region59: #{tpu_custom_call.1} parent=35 // pred_region
          %s1251 = smul.u32 4, %s30
          %s1253 = ssub.s32 512, 512
          %1254 = vsyncadd %s1239, %s1253
          %s1255 = smul.addr %s1251, 128
          %s1256 = scalar_lea.hbm %s4, %s1255
          %s1257 = sshll.u32 %s1242, 4
          %s1258 = int_to_ptr.vmem [resolvable:$true] %s1257
          %1263 = dma.vmem_to_hbm [thread:$0]  %s1258, 512, %s1256, %s1239, 128, 128, 8
        $region60: #{tpu_custom_call.1} parent=35 // pred_fallthru
          _
        // Predicated region
        $region61: #{tpu_custom_call.1} parent=35 // pred_check
          %p1264 = pneg %p172
        $region62: #{tpu_custom_call.1} parent=35 // pred_check_branch
          %1266 = sbr.rel (%p1264) target = $region64
        $region63: #{tpu_custom_call.1} parent=35 // pred_region
          %s1267 = ssub.s32 2, %s30
          %s1268 = smul.u32 4, %s1267
          %s1270 = ssub.s32 512, 512
          %1271 = vsyncadd %s1244, %s1270
          %s1272 = smul.addr %s1268, 128
          %s1273 = scalar_lea.hbm %s5, %s1272
          %s1274 = sshll.u32 %s1247, 4
          %s1275 = int_to_ptr.vmem [resolvable:$true] %s1274
          %1280 = dma.vmem_to_hbm [thread:$0]  %s1275, 512, %s1273, %s1244, 128, 128, 8
        $region64: #{tpu_custom_call.1} parent=35 // pred_fallthru
          _
      $region36: #{tpu_custom_call.1} parent=5 // pred_fallthru
        _
      %p1281 = scmp.le.s32.totalorder 2, %s25
      // Predicated region
      $region65: #{tpu_custom_call.1} parent=5 // pred_check
        %p1282 = pneg %p1281
      $region66: #{tpu_custom_call.1} parent=5 // pred_check_branch
        %1284 = sbr.rel (%p1282) target = $region68
      $region67: #{tpu_custom_call.1} parent=5 // pred_region
        %s1285 = ssub.s32 %s25, 2
        // Predicated region
        $region69: #{tpu_custom_call.1} parent=67 // pred_check
          %p1286 = pneg %p150
        $region70: #{tpu_custom_call.1} parent=67 // pred_check_branch
          %1288 = sbr.rel (%p1286) target = $region72
        $region71: #{tpu_custom_call.1} parent=67 // pred_region
          %s1289 = sand.u32 %s135, 1
          %s1290 = scalar_lea.sflag [#allocation8], %s1289
          %s1291 = sand.u32 %s135, 1
          %s1292 = smul.addr %s1291, 32
          %s1293 = scalar_lea.vmem [#allocation14], %s1292
          %1294 = dma.done %s1290, 512
        $region72: #{tpu_custom_call.1} parent=67 // pred_fallthru
          _
        // Predicated region
        $region73: #{tpu_custom_call.1} parent=67 // pred_check
          %p1295 = pneg %p178
        $region74: #{tpu_custom_call.1} parent=67 // pred_check_branch
          %1297 = sbr.rel (%p1295) target = $region76
        $region75: #{tpu_custom_call.1} parent=67 // pred_region
          %s1298 = sand.u32 %s163, 1
          %s1299 = scalar_lea.sflag [#allocation16], %s1298
          %s1300 = sand.u32 %s163, 1
          %s1301 = smul.addr %s1300, 32
          %s1302 = scalar_lea.vmem [#allocation15], %s1301
          %1303 = dma.done %s1299, 512
        $region76: #{tpu_custom_call.1} parent=67 // pred_fallthru
          _
      $region68: #{tpu_custom_call.1} parent=5 // pred_fallthru
        _
    $region6: #{tpu_custom_call.1} parent=1 // loop_footer
      %s29 = sadd.s32 1, %s25
    $region7: #{tpu_custom_call.1} parent=1 // loop_footer_branch
      %24 = sbr.rel target = $region3
    $region8: #{tpu_custom_call.1} parent=1 // loop_exit
      _
    %1304 = vsyncpa [#allocation7], 1
    %s1305 = scalar_lea.sflag [#allocation7], 1
    %1306 = vsyncpa %s1305, 1
    %1307 = vsyncpa [#allocation10], 1
    %s1308 = scalar_lea.sflag [#allocation10], 1
    %1309 = vsyncpa %s1308, 1
    %1310 = vsyncpa [#allocation13], 1
    %1311 = vsyncpa [#allocation8], 1
    %s1312 = scalar_lea.sflag [#allocation8], 1
    %1313 = vsyncpa %s1312, 1
    %1314 = vsyncpa [#allocation16], 1
    %s1315 = scalar_lea.sflag [#allocation16], 1
    %1316 = vsyncpa %s1315, 1

</llo_original>
